<compile_context>
chip_gen: v6e
topology: v6e:2x2x1
jax: 0.10.0
libtpu: 0.0.40
codegen_flags: <defaults>
</compile_context>

<pallas_src>
import functools

import numpy as np

import jax
import jax.numpy as jnp
from jax.experimental import pallas as pl
from jax.experimental.pallas import tpu as pltpu

TASKREP = 5     # taskrepsize
PERFREP = 2     # perfrepsize
HID = 15        # H inside zrep MLP


def _round_up(x, m):
    return ((x + m - 1) // m) * m


# ---------------------------------------------------------------------------
# One-time (host/numpy) weight folding + packing
# ---------------------------------------------------------------------------

def make_weight_layout(nfeats, nperf):
    """Row layout of the single packed weight array; every block starts on an
    8-row (sublane tile) boundary."""
    T, H = TASKREP, HID
    blocks = [
        ("w1", nfeats, H),
        ("w2", H, H),
        ("w3", H, T),            # applied only to the pred rows
        ("w3wih", H, 3 * T),     # w3 @ wih_task, applied to obs rows' h2
        ("wihp", nperf, 3 * T),  # wp @ wih_perf, applied to raw perf rows
        ("whh", T, 3 * T),       # GRU weight_hh (transposed), gates [r|z|n]
        ("bias", 8, 3 * T),      # rows: b1, b2, b3, bih_total, bhh
    ]
    layout = {}
    off = 0
    for name, r, c in blocks:
        layout[name] = (off, r, c)
        off += _round_up(r, 8)
    width = max(H, 3 * T)
    return layout, off, width


def pack_weights(params, nfeats, nperf):
    """Fold + pack all weights once (numpy, float64 folds) -> one f32 array."""
    T, H = TASKREP, HID
    layout, nrows, width = make_weight_layout(nfeats, nperf)

    def npf(x):
        return np.asarray(x, dtype=np.float64)

    wih = npf(params["wih"])
    wih_t, wih_p = wih[:T, :], wih[T:, :]
    w3wih = npf(params["w3"]) @ wih_t                           # (H, 3T)
    wihp = npf(params["wp"]) @ wih_p                            # (nperf, 3T)
    bih_tot = (npf(params["bih"])
               + npf(params["bp"]) @ wih_p
               + npf(params["b3"]) @ wih_t)                     # (1, 3T)

    w = np.zeros((nrows, width), np.float32)

    def put(name, a):
        off, r, c = layout[name]
        a = np.asarray(a, np.float32)
        assert a.shape == (r, c), (name, a.shape, (r, c))
        w[off:off + r, :c] = a

    put("w1", params["w1"])
    put("w2", params["w2"])
    put("w3", params["w3"])
    put("w3wih", w3wih)
    put("wihp", wihp)
    put("whh", params["whh"])
    boff, _, _ = layout["bias"]
    w[boff + 0, :H] = np.asarray(params["b1"], np.float32)[0]
    w[boff + 1, :H] = np.asarray(params["b2"], np.float32)[0]
    w[boff + 2, :T] = np.asarray(params["b3"], np.float32)[0]
    w[boff + 3, :3 * T] = bih_tot.astype(np.float32)[0]
    w[boff + 4, :3 * T] = np.asarray(params["bhh"], np.float32)[0]
    return jnp.asarray(w), layout


# ---------------------------------------------------------------------------
# Kernel
# ---------------------------------------------------------------------------

def neural_trust_kernel(S, Bp, nfeats, nperf, wl,
                        data_ref, w_ref, scale_ref, out_ref):
    T, H = TASKREP, HID
    SBp = S * Bp
    p0 = SBp + Bp                     # perf block start (tile-aligned)

    def wblk(name):
        off, r, c = wl[name]
        return w_ref[off:off + r, 0:c]

    w1, w2, w3 = wblk("w1"), wblk("w2"), wblk("w3")
    w3wih, wihp, whh = wblk("w3wih"), wblk("wihp"), wblk("whh")
    boff, _, _ = wl["bias"]
    b1 = w_ref[boff + 0:boff + 1, 0:H]
    b2 = w_ref[boff + 1:boff + 2, 0:H]
    b3 = w_ref[boff + 2:boff + 3, 0:T]
    bih = w_ref[boff + 3:boff + 4, 0:3 * T]      # bih + b3@wih_t + bp@wih_p
    bhh = w_ref[boff + 4:boff + 5, 0:3 * T]

    # Shared zrep trunk over [obs ; pred] rows in one pass.
    x_all = data_ref[0:p0, 0:nfeats]                               # (SBp+Bp, F)
    h1 = jnp.tanh(jnp.dot(x_all, w1, preferred_element_type=jnp.float32) + b1)
    h2 = jnp.tanh(jnp.dot(h1, w2, preferred_element_type=jnp.float32) + b2)
    h2_obs = h2[0:SBp, :]
    zkpred = jnp.dot(h2[SBp:p0, :], w3,
                     preferred_element_type=jnp.float32) + b3      # (Bp, T)

    # GRU input-side gates for all steps at once (folded weights; the zk / zperf
    # intermediates and the lane-offset concat are gone).
    perf = data_ref[p0:p0 + SBp, 0:nperf]
    gi_all = (jnp.dot(h2_obs, w3wih, preferred_element_type=jnp.float32)
              + jnp.dot(perf, wihp, preferred_element_type=jnp.float32)
              + bih)                                               # (SBp, 3T)

    # Loop-invariant broadcasts hoisted out of the recurrence.
    whh_rows = [jnp.broadcast_to(whh[k:k + 1, :], (Bp, 3 * T)) for k in range(T)]
    gh_init = jnp.broadcast_to(bhh, (Bp, 3 * T))

    # GRU recurrence (PyTorch gate order r, z, n); S static -> unrolled.
    # h @ W_hh runs on the VPU as one stacked broadcast-FMA per k (no per-step
    # MXU round trips); r/z share one fused sigmoid over the (Bp, 2T) tile.
    h = jnp.zeros((Bp, T), jnp.float32)
    for t in range(S):
        gi = gi_all[t * Bp:(t + 1) * Bp, :]                        # tile-aligned
        gh = gh_init
        for k in range(T):
            gh = gh + h[:, k:k + 1] * whh_rows[k]
        rz = jax.nn.sigmoid(gi[:, 0:2 * T] + gh[:, 0:2 * T])
        r = rz[:, 0:T]
        z = rz[:, T:2 * T]
        n = jnp.tanh(gi[:, 2 * T:3 * T] + r * gh[:, 2 * T:3 * T])  # bhh_n inside r*( )
        h = (1.0 - z) * n + z * h

    # pz = bmm(output[-1], zkpred) == per-row dot; scale = exp(-sigma) (SMEM).
    pz = jnp.sum(h * zkpred, axis=-1, keepdims=True)               # (Bp, 1)
    ztrust = jax.nn.sigmoid(pz * scale_ref[0])
    out_ref[...] = jnp.clip(ztrust, 0.01, 0.99)


# ---------------------------------------------------------------------------
# Forward builder (weights packed once; per-call work = 1 pad/concat + kernel)
# ---------------------------------------------------------------------------

def build_forward(params, nfeats, nperf):
    wpack, layout = pack_weights(params, nfeats, nperf)
    scale = jnp.asarray(
        np.exp(-np.asarray(params["sigma"], np.float64)).reshape(-1)[:1],
        dtype=jnp.float32)                                         # exp(-sigma), (1,)

    @jax.jit
    def forward(inptasksobs, inptasksperf, inptaskspred):
        S, B, F = inptasksobs.shape
        P = inptasksperf.shape[-1]
        Bp = _round_up(B, 8)
        width = max(F, P)
        f32 = jnp.float32

        obs_p = jnp.pad(inptasksobs.astype(f32),
                        ((0, 0), (0, Bp - B), (0, width - F))).reshape(S * Bp, width)
        pred_p = jnp.pad(inptaskspred.astype(f32),
                         ((0, Bp - B), (0, width - F)))
        perf_p = jnp.pad(inptasksperf.astype(f32),
                         ((0, 0), (0, Bp - B), (0, width - P))).reshape(S * Bp, width)
        data = jnp.concatenate([obs_p, pred_p, perf_p], axis=0)

        kernel = functools.partial(neural_trust_kernel, S, Bp, F, P, layout)
        out = pl.pallas_call(
            kernel,
            out_shape=jax.ShapeDtypeStruct((Bp, 1), jnp.float32),
            in_specs=[
                pl.BlockSpec(memory_space=pltpu.MemorySpace.VMEM),   # activations
                pl.BlockSpec(memory_space=pltpu.MemorySpace.VMEM),   # packed weights
                pl.BlockSpec(memory_space=pltpu.MemorySpace.SMEM),   # exp(-sigma)
            ],
            out_specs=pl.BlockSpec(memory_space=pltpu.MemorySpace.VMEM),
        )(data, wpack, scale)
        return out[:B].reshape(B, 1, 1)

    return forward


# ---------------------------------------------------------------------------
# Params / reference
# ---------------------------------------------------------------------------

def init_params(key, nfeats, nperf):
    """Deterministic init mirroring PyTorch default Linear / GRU init shapes."""
    def linear(key, fan_in, fan_out):
        kw, kb = jax.random.split(key)
        bound = 1.0 / jnp.sqrt(fan_in)
        w = jax.random.uniform(kw, (fan_in, fan_out), jnp.float32, -bound, bound)
        b = jax.random.uniform(kb, (1, fan_out), jnp.float32, -bound, bound)
        return w, b

    keys = jax.random.split(key, 7)
    repsize = TASKREP + PERFREP
    w1, b1 = linear(keys[0], nfeats, HID)
    w2, b2 = linear(keys[1], HID, HID)
    w3, b3 = linear(keys[2], HID, TASKREP)
    wp, bp = linear(keys[3], nperf, PERFREP)
    gbound = 1.0 / jnp.sqrt(TASKREP)
    wih = jax.random.uniform(keys[4], (repsize, 3 * TASKREP), jnp.float32, -gbound, gbound)
    whh = jax.random.uniform(keys[5], (TASKREP, 3 * TASKREP), jnp.float32, -gbound, gbound)
    kb1, kb2 = jax.random.split(keys[6])
    bih = jax.random.uniform(kb1, (1, 3 * TASKREP), jnp.float32, -gbound, gbound)
    bhh = jax.random.uniform(kb2, (1, 3 * TASKREP), jnp.float32, -gbound, gbound)
    sigma = jnp.zeros((1, 1), jnp.float32)
    # TODO(synk): alpha/beta/obslin params exist in __init__ but are unused in forward; omitted.
    return dict(w1=w1, b1=b1, w2=w2, b2=b2, w3=w3, b3=b3,
                wp=wp, bp=bp, wih=wih, bih=bih, whh=whh, bhh=bhh, sigma=sigma)


def reference_forward(params, obs, perf, pred):
    """Pure-JAX mirror of the PyTorch forward, for verification."""
    def zrep(x):
        h1 = jnp.tanh(x @ params["w1"] + params["b1"])
        h2 = jnp.tanh(h1 @ params["w2"] + params["b2"])
        return h2 @ params["w3"] + params["b3"]

    S, B, _ = obs.shape
    T = TASKREP
    zk = zrep(obs)                                              # (S, B, T)
    zperf = perf @ params["wp"] + params["bp"]                  # (S, B, P)
    zkperf = jnp.concatenate([zk, zperf], axis=2)               # (S, B, repsize)
    zkpred = zrep(pred)                                         # (B, T)

    h = jnp.zeros((B, T), jnp.float32)
    for t in range(S):
        gi = zkperf[t] @ params["wih"] + params["bih"]
        gh = h @ params["whh"] + params["bhh"]
        r = jax.nn.sigmoid(gi[:, :T] + gh[:, :T])
        z = jax.nn.sigmoid(gi[:, T:2 * T] + gh[:, T:2 * T])
        n = jnp.tanh(gi[:, 2 * T:] + r * gh[:, 2 * T:])
        h = (1.0 - z) * n + z * h

    pz = jnp.sum(h * zkpred, axis=-1, keepdims=True)[:, :, None]  # (B,1,1)
    ztrust = 1.0 / (1.0 + jnp.exp(-pz / jnp.exp(params["sigma"][0, 0])))
    return jnp.clip(ztrust, 0.01, 0.99)


if __name__ == "__main__":
    S, B, NFEATS, NPERF = 8, 2, 8, 3   # seq=8, batch=2, task features=8, perf features=3

    key = jax.random.PRNGKey(0)
    kp, ko, kf, kq = jax.random.split(key, 4)
    params = init_params(kp, NFEATS, NPERF)

    inptasksobs = jax.random.normal(ko, (S, B, NFEATS), jnp.float32)
    inptasksperf = jax.random.normal(kf, (S, B, NPERF), jnp.float32)
    inptaskspred = jax.random.normal(kq, (B, NFEATS), jnp.float32)

    forward = build_forward(params, NFEATS, NPERF)          # weights packed once here
    out = jax.block_until_ready(forward(inptasksobs, inptasksperf, inptaskspred))

    ref = reference_forward(params, inptasksobs, inptasksperf, inptaskspred)
    assert out.shape == (B, 1, 1)
    # Tolerance absorbs the (exact-algebra) weight folding reassociation.
    assert jnp.allclose(out, ref, rtol=1e-3, atol=1e-3), (out, ref)

    print("KERNEL_OK")
</pallas_src>

<mosaic_0001>
module attributes {stable_mosaic.version = 11 : i64} {
  func.func @neural_trust_kernel(%arg0: memref<136x8xf32, #tpu.memory_space<vmem>>, %arg1: memref<80x15xf32, #tpu.memory_space<vmem>>, %arg2: memref<1xf32, #tpu.memory_space<smem>>, %arg3: memref<8x1xf32, #tpu.memory_space<vmem>>) attributes {dimension_semantics = [], scalar_prefetch = 0 : i64, scratch_operands = 0 : i64, tpu.core_type = #tpu.core_type<tc>} {
    %c0 = arith.constant 0 : index
    %c0_0 = arith.constant 0 : index
    %0 = vector.load %arg1[%c0, %c0_0] : memref<80x15xf32, #tpu.memory_space<vmem>>, vector<8x15xf32>
    %c8 = arith.constant 8 : index
    %c0_1 = arith.constant 0 : index
    %1 = vector.load %arg1[%c8, %c0_1] : memref<80x15xf32, #tpu.memory_space<vmem>>, vector<15x15xf32>
    %c24 = arith.constant 24 : index
    %c0_2 = arith.constant 0 : index
    %2 = vector.load %arg1[%c24, %c0_2] : memref<80x15xf32, #tpu.memory_space<vmem>>, vector<15x5xf32>
    %c40 = arith.constant 40 : index
    %c0_3 = arith.constant 0 : index
    %3 = vector.load %arg1[%c40, %c0_3] : memref<80x15xf32, #tpu.memory_space<vmem>>, vector<15x15xf32>
    %c56 = arith.constant 56 : index
    %c0_4 = arith.constant 0 : index
    %4 = vector.load %arg1[%c56, %c0_4] : memref<80x15xf32, #tpu.memory_space<vmem>>, vector<3x15xf32>
    %c64 = arith.constant 64 : index
    %c0_5 = arith.constant 0 : index
    %5 = vector.load %arg1[%c64, %c0_5] : memref<80x15xf32, #tpu.memory_space<vmem>>, vector<5x15xf32>
    %c72 = arith.constant 72 : index
    %c0_6 = arith.constant 0 : index
    %6 = vector.load %arg1[%c72, %c0_6] : memref<80x15xf32, #tpu.memory_space<vmem>>, vector<1x15xf32>
    %c73 = arith.constant 73 : index
    %c0_7 = arith.constant 0 : index
    %7 = vector.load %arg1[%c73, %c0_7] : memref<80x15xf32, #tpu.memory_space<vmem>>, vector<1x15xf32>
    %c74 = arith.constant 74 : index
    %c0_8 = arith.constant 0 : index
    %8 = vector.load %arg1[%c74, %c0_8] : memref<80x15xf32, #tpu.memory_space<vmem>>, vector<1x5xf32>
    %c75 = arith.constant 75 : index
    %c0_9 = arith.constant 0 : index
    %9 = vector.load %arg1[%c75, %c0_9] : memref<80x15xf32, #tpu.memory_space<vmem>>, vector<1x15xf32>
    %c76 = arith.constant 76 : index
    %c0_10 = arith.constant 0 : index
    %10 = vector.load %arg1[%c76, %c0_10] : memref<80x15xf32, #tpu.memory_space<vmem>>, vector<1x15xf32>
    %c0_11 = arith.constant 0 : index
    %c0_12 = arith.constant 0 : index
    %11 = vector.load %arg0[%c0_11, %c0_12] : memref<136x8xf32, #tpu.memory_space<vmem>>, vector<72x8xf32>
    %cst = arith.constant dense<0.000000e+00> : vector<72x15xf32>
    %12 = tpu.matmul %11, %0, %cst {dimension_numbers = #tpu.dot_dimension_numbers<[1], [0], [0], [1], [0, 0, 1, 1], [], []>} : vector<72x8xf32>, vector<8x15xf32>, vector<72x15xf32> -> vector<72x15xf32>
    %13 = vector.broadcast %6 : vector<1x15xf32> to vector<72x15xf32>
    %14 = arith.addf %12, %13 : vector<72x15xf32>
    %15 = math.tanh %14 : vector<72x15xf32>
    %cst_13 = arith.constant dense<0.000000e+00> : vector<72x15xf32>
    %16 = tpu.matmul %15, %1, %cst_13 {dimension_numbers = #tpu.dot_dimension_numbers<[1], [0], [0], [1], [0, 0, 1, 1], [], []>} : vector<72x15xf32>, vector<15x15xf32>, vector<72x15xf32> -> vector<72x15xf32>
    %17 = vector.broadcast %7 : vector<1x15xf32> to vector<72x15xf32>
    %18 = arith.addf %16, %17 : vector<72x15xf32>
    %19 = math.tanh %18 : vector<72x15xf32>
    %20 = vector.extract_strided_slice %19 {offsets = [0, 0], sizes = [64, 15], strides = [1, 1]} : vector<72x15xf32> to vector<64x15xf32>
    %21 = vector.extract_strided_slice %19 {offsets = [64, 0], sizes = [8, 15], strides = [1, 1]} : vector<72x15xf32> to vector<8x15xf32>
    %cst_14 = arith.constant dense<0.000000e+00> : vector<8x5xf32>
    %22 = tpu.matmul %21, %2, %cst_14 {dimension_numbers = #tpu.dot_dimension_numbers<[1], [0], [0], [1], [0, 0, 1, 1], [], []>} : vector<8x15xf32>, vector<15x5xf32>, vector<8x5xf32> -> vector<8x5xf32>
    %23 = vector.broadcast %8 : vector<1x5xf32> to vector<8x5xf32>
    %24 = arith.addf %22, %23 : vector<8x5xf32>
    %c72_15 = arith.constant 72 : index
    %c0_16 = arith.constant 0 : index
    %25 = vector.load %arg0[%c72_15, %c0_16] : memref<136x8xf32, #tpu.memory_space<vmem>>, vector<64x3xf32>
    %cst_17 = arith.constant dense<0.000000e+00> : vector<64x15xf32>
    %26 = tpu.matmul %20, %3, %cst_17 {dimension_numbers = #tpu.dot_dimension_numbers<[1], [0], [0], [1], [0, 0, 1, 1], [], []>} : vector<64x15xf32>, vector<15x15xf32>, vector<64x15xf32> -> vector<64x15xf32>
    %cst_18 = arith.constant dense<0.000000e+00> : vector<64x15xf32>
    %27 = tpu.matmul %25, %4, %cst_18 {dimension_numbers = #tpu.dot_dimension_numbers<[1], [0], [0], [1], [0, 0, 1, 1], [], []>} : vector<64x3xf32>, vector<3x15xf32>, vector<64x15xf32> -> vector<64x15xf32>
    %28 = arith.addf %26, %27 : vector<64x15xf32>
    %29 = vector.broadcast %9 : vector<1x15xf32> to vector<64x15xf32>
    %30 = arith.addf %28, %29 : vector<64x15xf32>
    %31 = vector.extract_strided_slice %5 {offsets = [0, 0], sizes = [1, 15], strides = [1, 1]} : vector<5x15xf32> to vector<1x15xf32>
    %32 = vector.shape_cast %31 : vector<1x15xf32> to vector<1x15xf32>
    %33 = vector.broadcast %32 : vector<1x15xf32> to vector<8x15xf32>
    %34 = vector.extract_strided_slice %5 {offsets = [1, 0], sizes = [1, 15], strides = [1, 1]} : vector<5x15xf32> to vector<1x15xf32>
    %35 = vector.shape_cast %34 : vector<1x15xf32> to vector<1x15xf32>
    %36 = vector.broadcast %35 : vector<1x15xf32> to vector<8x15xf32>
    %37 = vector.extract_strided_slice %5 {offsets = [2, 0], sizes = [1, 15], strides = [1, 1]} : vector<5x15xf32> to vector<1x15xf32>
    %38 = vector.shape_cast %37 : vector<1x15xf32> to vector<1x15xf32>
    %39 = vector.broadcast %38 : vector<1x15xf32> to vector<8x15xf32>
    %40 = vector.extract_strided_slice %5 {offsets = [3, 0], sizes = [1, 15], strides = [1, 1]} : vector<5x15xf32> to vector<1x15xf32>
    %41 = vector.shape_cast %40 : vector<1x15xf32> to vector<1x15xf32>
    %42 = vector.broadcast %41 : vector<1x15xf32> to vector<8x15xf32>
    %43 = vector.extract_strided_slice %5 {offsets = [4, 0], sizes = [1, 15], strides = [1, 1]} : vector<5x15xf32> to vector<1x15xf32>
    %44 = vector.shape_cast %43 : vector<1x15xf32> to vector<1x15xf32>
    %45 = vector.broadcast %44 : vector<1x15xf32> to vector<8x15xf32>
    %46 = vector.shape_cast %10 : vector<1x15xf32> to vector<1x15xf32>
    %47 = vector.broadcast %46 : vector<1x15xf32> to vector<8x15xf32>
    %cst_19 = arith.constant 0.000000e+00 : f32
    %48 = vector.broadcast %cst_19 : f32 to vector<8x5xf32>
    %49 = vector.extract_strided_slice %30 {offsets = [0, 0], sizes = [8, 15], strides = [1, 1]} : vector<64x15xf32> to vector<8x15xf32>
    %50 = vector.extract_strided_slice %48 {offsets = [0, 0], sizes = [8, 1], strides = [1, 1]} : vector<8x5xf32> to vector<8x1xf32>
    %51 = vector.broadcast %50 : vector<8x1xf32> to vector<8x15xf32>
    %52 = arith.mulf %51, %33 : vector<8x15xf32>
    %53 = arith.addf %47, %52 : vector<8x15xf32>
    %54 = vector.extract_strided_slice %48 {offsets = [0, 1], sizes = [8, 1], strides = [1, 1]} : vector<8x5xf32> to vector<8x1xf32>
    %55 = vector.broadcast %54 : vector<8x1xf32> to vector<8x15xf32>
    %56 = arith.mulf %55, %36 : vector<8x15xf32>
    %57 = arith.addf %53, %56 : vector<8x15xf32>
    %58 = vector.extract_strided_slice %48 {offsets = [0, 2], sizes = [8, 1], strides = [1, 1]} : vector<8x5xf32> to vector<8x1xf32>
    %59 = vector.broadcast %58 : vector<8x1xf32> to vector<8x15xf32>
    %60 = arith.mulf %59, %39 : vector<8x15xf32>
    %61 = arith.addf %57, %60 : vector<8x15xf32>
    %62 = vector.extract_strided_slice %48 {offsets = [0, 3], sizes = [8, 1], strides = [1, 1]} : vector<8x5xf32> to vector<8x1xf32>
    %63 = vector.broadcast %62 : vector<8x1xf32> to vector<8x15xf32>
    %64 = arith.mulf %63, %42 : vector<8x15xf32>
    %65 = arith.addf %61, %64 : vector<8x15xf32>
    %66 = vector.extract_strided_slice %48 {offsets = [0, 4], sizes = [8, 1], strides = [1, 1]} : vector<8x5xf32> to vector<8x1xf32>
    %67 = vector.broadcast %66 : vector<8x1xf32> to vector<8x15xf32>
    %68 = arith.mulf %67, %45 : vector<8x15xf32>
    %69 = arith.addf %65, %68 : vector<8x15xf32>
    %70 = vector.extract_strided_slice %49 {offsets = [0, 0], sizes = [8, 10], strides = [1, 1]} : vector<8x15xf32> to vector<8x10xf32>
    %71 = vector.extract_strided_slice %69 {offsets = [0, 0], sizes = [8, 10], strides = [1, 1]} : vector<8x15xf32> to vector<8x10xf32>
    %72 = arith.addf %70, %71 : vector<8x10xf32>
    %73 = arith.negf %72 : vector<8x10xf32>
    %74 = math.exp %73 : vector<8x10xf32>
    %cst_20 = arith.constant 1.000000e+00 : f32
    %75 = vector.broadcast %cst_20 : f32 to vector<8x10xf32>
    %76 = arith.addf %75, %74 : vector<8x10xf32>
    %77 = arith.divf %75, %76 : vector<8x10xf32>
    %78 = vector.extract_strided_slice %77 {offsets = [0, 0], sizes = [8, 5], strides = [1, 1]} : vector<8x10xf32> to vector<8x5xf32>
    %79 = vector.extract_strided_slice %77 {offsets = [0, 5], sizes = [8, 5], strides = [1, 1]} : vector<8x10xf32> to vector<8x5xf32>
    %80 = vector.extract_strided_slice %49 {offsets = [0, 10], sizes = [8, 5], strides = [1, 1]} : vector<8x15xf32> to vector<8x5xf32>
    %81 = vector.extract_strided_slice %69 {offsets = [0, 10], sizes = [8, 5], strides = [1, 1]} : vector<8x15xf32> to vector<8x5xf32>
    %82 = arith.mulf %78, %81 : vector<8x5xf32>
    %83 = arith.addf %80, %82 : vector<8x5xf32>
    %84 = math.tanh %83 : vector<8x5xf32>
    %cst_21 = arith.constant 1.000000e+00 : f32
    %85 = vector.broadcast %cst_21 : f32 to vector<8x5xf32>
    %86 = arith.subf %85, %79 : vector<8x5xf32>
    %87 = arith.mulf %86, %84 : vector<8x5xf32>
    %88 = arith.mulf %79, %48 : vector<8x5xf32>
    %89 = arith.addf %87, %88 : vector<8x5xf32>
    %90 = vector.extract_strided_slice %30 {offsets = [8, 0], sizes = [8, 15], strides = [1, 1]} : vector<64x15xf32> to vector<8x15xf32>
    %91 = vector.extract_strided_slice %89 {offsets = [0, 0], sizes = [8, 1], strides = [1, 1]} : vector<8x5xf32> to vector<8x1xf32>
    %92 = vector.broadcast %91 : vector<8x1xf32> to vector<8x15xf32>
    %93 = arith.mulf %92, %33 : vector<8x15xf32>
    %94 = arith.addf %47, %93 : vector<8x15xf32>
    %95 = vector.extract_strided_slice %89 {offsets = [0, 1], sizes = [8, 1], strides = [1, 1]} : vector<8x5xf32> to vector<8x1xf32>
    %96 = vector.broadcast %95 : vector<8x1xf32> to vector<8x15xf32>
    %97 = arith.mulf %96, %36 : vector<8x15xf32>
    %98 = arith.addf %94, %97 : vector<8x15xf32>
    %99 = vector.extract_strided_slice %89 {offsets = [0, 2], sizes = [8, 1], strides = [1, 1]} : vector<8x5xf32> to vector<8x1xf32>
    %100 = vector.broadcast %99 : vector<8x1xf32> to vector<8x15xf32>
    %101 = arith.mulf %100, %39 : vector<8x15xf32>
    %102 = arith.addf %98, %101 : vector<8x15xf32>
    %103 = vector.extract_strided_slice %89 {offsets = [0, 3], sizes = [8, 1], strides = [1, 1]} : vector<8x5xf32> to vector<8x1xf32>
    %104 = vector.broadcast %103 : vector<8x1xf32> to vector<8x15xf32>
    %105 = arith.mulf %104, %42 : vector<8x15xf32>
    %106 = arith.addf %102, %105 : vector<8x15xf32>
    %107 = vector.extract_strided_slice %89 {offsets = [0, 4], sizes = [8, 1], strides = [1, 1]} : vector<8x5xf32> to vector<8x1xf32>
    %108 = vector.broadcast %107 : vector<8x1xf32> to vector<8x15xf32>
    %109 = arith.mulf %108, %45 : vector<8x15xf32>
    %110 = arith.addf %106, %109 : vector<8x15xf32>
    %111 = vector.extract_strided_slice %90 {offsets = [0, 0], sizes = [8, 10], strides = [1, 1]} : vector<8x15xf32> to vector<8x10xf32>
    %112 = vector.extract_strided_slice %110 {offsets = [0, 0], sizes = [8, 10], strides = [1, 1]} : vector<8x15xf32> to vector<8x10xf32>
    %113 = arith.addf %111, %112 : vector<8x10xf32>
    %114 = arith.negf %113 : vector<8x10xf32>
    %115 = math.exp %114 : vector<8x10xf32>
    %cst_22 = arith.constant 1.000000e+00 : f32
    %116 = vector.broadcast %cst_22 : f32 to vector<8x10xf32>
    %117 = arith.addf %116, %115 : vector<8x10xf32>
    %118 = arith.divf %116, %117 : vector<8x10xf32>
    %119 = vector.extract_strided_slice %118 {offsets = [0, 0], sizes = [8, 5], strides = [1, 1]} : vector<8x10xf32> to vector<8x5xf32>
    %120 = vector.extract_strided_slice %118 {offsets = [0, 5], sizes = [8, 5], strides = [1, 1]} : vector<8x10xf32> to vector<8x5xf32>
    %121 = vector.extract_strided_slice %90 {offsets = [0, 10], sizes = [8, 5], strides = [1, 1]} : vector<8x15xf32> to vector<8x5xf32>
    %122 = vector.extract_strided_slice %110 {offsets = [0, 10], sizes = [8, 5], strides = [1, 1]} : vector<8x15xf32> to vector<8x5xf32>
    %123 = arith.mulf %119, %122 : vector<8x5xf32>
    %124 = arith.addf %121, %123 : vector<8x5xf32>
    %125 = math.tanh %124 : vector<8x5xf32>
    %cst_23 = arith.constant 1.000000e+00 : f32
    %126 = vector.broadcast %cst_23 : f32 to vector<8x5xf32>
    %127 = arith.subf %126, %120 : vector<8x5xf32>
    %128 = arith.mulf %127, %125 : vector<8x5xf32>
    %129 = arith.mulf %120, %89 : vector<8x5xf32>
    %130 = arith.addf %128, %129 : vector<8x5xf32>
    %131 = vector.extract_strided_slice %30 {offsets = [16, 0], sizes = [8, 15], strides = [1, 1]} : vector<64x15xf32> to vector<8x15xf32>
    %132 = vector.extract_strided_slice %130 {offsets = [0, 0], sizes = [8, 1], strides = [1, 1]} : vector<8x5xf32> to vector<8x1xf32>
    %133 = vector.broadcast %132 : vector<8x1xf32> to vector<8x15xf32>
    %134 = arith.mulf %133, %33 : vector<8x15xf32>
    %135 = arith.addf %47, %134 : vector<8x15xf32>
    %136 = vector.extract_strided_slice %130 {offsets = [0, 1], sizes = [8, 1], strides = [1, 1]} : vector<8x5xf32> to vector<8x1xf32>
    %137 = vector.broadcast %136 : vector<8x1xf32> to vector<8x15xf32>
    %138 = arith.mulf %137, %36 : vector<8x15xf32>
    %139 = arith.addf %135, %138 : vector<8x15xf32>
    %140 = vector.extract_strided_slice %130 {offsets = [0, 2], sizes = [8, 1], strides = [1, 1]} : vector<8x5xf32> to vector<8x1xf32>
    %141 = vector.broadcast %140 : vector<8x1xf32> to vector<8x15xf32>
    %142 = arith.mulf %141, %39 : vector<8x15xf32>
    %143 = arith.addf %139, %142 : vector<8x15xf32>
    %144 = vector.extract_strided_slice %130 {offsets = [0, 3], sizes = [8, 1], strides = [1, 1]} : vector<8x5xf32> to vector<8x1xf32>
    %145 = vector.broadcast %144 : vector<8x1xf32> to vector<8x15xf32>
    %146 = arith.mulf %145, %42 : vector<8x15xf32>
    %147 = arith.addf %143, %146 : vector<8x15xf32>
    %148 = vector.extract_strided_slice %130 {offsets = [0, 4], sizes = [8, 1], strides = [1, 1]} : vector<8x5xf32> to vector<8x1xf32>
    %149 = vector.broadcast %148 : vector<8x1xf32> to vector<8x15xf32>
    %150 = arith.mulf %149, %45 : vector<8x15xf32>
    %151 = arith.addf %147, %150 : vector<8x15xf32>
    %152 = vector.extract_strided_slice %131 {offsets = [0, 0], sizes = [8, 10], strides = [1, 1]} : vector<8x15xf32> to vector<8x10xf32>
    %153 = vector.extract_strided_slice %151 {offsets = [0, 0], sizes = [8, 10], strides = [1, 1]} : vector<8x15xf32> to vector<8x10xf32>
    %154 = arith.addf %152, %153 : vector<8x10xf32>
    %155 = arith.negf %154 : vector<8x10xf32>
    %156 = math.exp %155 : vector<8x10xf32>
    %cst_24 = arith.constant 1.000000e+00 : f32
    %157 = vector.broadcast %cst_24 : f32 to vector<8x10xf32>
    %158 = arith.addf %157, %156 : vector<8x10xf32>
    %159 = arith.divf %157, %158 : vector<8x10xf32>
    %160 = vector.extract_strided_slice %159 {offsets = [0, 0], sizes = [8, 5], strides = [1, 1]} : vector<8x10xf32> to vector<8x5xf32>
    %161 = vector.extract_strided_slice %159 {offsets = [0, 5], sizes = [8, 5], strides = [1, 1]} : vector<8x10xf32> to vector<8x5xf32>
    %162 = vector.extract_strided_slice %131 {offsets = [0, 10], sizes = [8, 5], strides = [1, 1]} : vector<8x15xf32> to vector<8x5xf32>
    %163 = vector.extract_strided_slice %151 {offsets = [0, 10], sizes = [8, 5], strides = [1, 1]} : vector<8x15xf32> to vector<8x5xf32>
    %164 = arith.mulf %160, %163 : vector<8x5xf32>
    %165 = arith.addf %162, %164 : vector<8x5xf32>
    %166 = math.tanh %165 : vector<8x5xf32>
    %cst_25 = arith.constant 1.000000e+00 : f32
    %167 = vector.broadcast %cst_25 : f32 to vector<8x5xf32>
    %168 = arith.subf %167, %161 : vector<8x5xf32>
    %169 = arith.mulf %168, %166 : vector<8x5xf32>
    %170 = arith.mulf %161, %130 : vector<8x5xf32>
    %171 = arith.addf %169, %170 : vector<8x5xf32>
    %172 = vector.extract_strided_slice %30 {offsets = [24, 0], sizes = [8, 15], strides = [1, 1]} : vector<64x15xf32> to vector<8x15xf32>
    %173 = vector.extract_strided_slice %171 {offsets = [0, 0], sizes = [8, 1], strides = [1, 1]} : vector<8x5xf32> to vector<8x1xf32>
    %174 = vector.broadcast %173 : vector<8x1xf32> to vector<8x15xf32>
    %175 = arith.mulf %174, %33 : vector<8x15xf32>
    %176 = arith.addf %47, %175 : vector<8x15xf32>
    %177 = vector.extract_strided_slice %171 {offsets = [0, 1], sizes = [8, 1], strides = [1, 1]} : vector<8x5xf32> to vector<8x1xf32>
    %178 = vector.broadcast %177 : vector<8x1xf32> to vector<8x15xf32>
    %179 = arith.mulf %178, %36 : vector<8x15xf32>
    %180 = arith.addf %176, %179 : vector<8x15xf32>
    %181 = vector.extract_strided_slice %171 {offsets = [0, 2], sizes = [8, 1], strides = [1, 1]} : vector<8x5xf32> to vector<8x1xf32>
    %182 = vector.broadcast %181 : vector<8x1xf32> to vector<8x15xf32>
    %183 = arith.mulf %182, %39 : vector<8x15xf32>
    %184 = arith.addf %180, %183 : vector<8x15xf32>
    %185 = vector.extract_strided_slice %171 {offsets = [0, 3], sizes = [8, 1], strides = [1, 1]} : vector<8x5xf32> to vector<8x1xf32>
    %186 = vector.broadcast %185 : vector<8x1xf32> to vector<8x15xf32>
    %187 = arith.mulf %186, %42 : vector<8x15xf32>
    %188 = arith.addf %184, %187 : vector<8x15xf32>
    %189 = vector.extract_strided_slice %171 {offsets = [0, 4], sizes = [8, 1], strides = [1, 1]} : vector<8x5xf32> to vector<8x1xf32>
    %190 = vector.broadcast %189 : vector<8x1xf32> to vector<8x15xf32>
    %191 = arith.mulf %190, %45 : vector<8x15xf32>
    %192 = arith.addf %188, %191 : vector<8x15xf32>
    %193 = vector.extract_strided_slice %172 {offsets = [0, 0], sizes = [8, 10], strides = [1, 1]} : vector<8x15xf32> to vector<8x10xf32>
    %194 = vector.extract_strided_slice %192 {offsets = [0, 0], sizes = [8, 10], strides = [1, 1]} : vector<8x15xf32> to vector<8x10xf32>
    %195 = arith.addf %193, %194 : vector<8x10xf32>
    %196 = arith.negf %195 : vector<8x10xf32>
    %197 = math.exp %196 : vector<8x10xf32>
    %cst_26 = arith.constant 1.000000e+00 : f32
    %198 = vector.broadcast %cst_26 : f32 to vector<8x10xf32>
    %199 = arith.addf %198, %197 : vector<8x10xf32>
    %200 = arith.divf %198, %199 : vector<8x10xf32>
    %201 = vector.extract_strided_slice %200 {offsets = [0, 0], sizes = [8, 5], strides = [1, 1]} : vector<8x10xf32> to vector<8x5xf32>
    %202 = vector.extract_strided_slice %200 {offsets = [0, 5], sizes = [8, 5], strides = [1, 1]} : vector<8x10xf32> to vector<8x5xf32>
    %203 = vector.extract_strided_slice %172 {offsets = [0, 10], sizes = [8, 5], strides = [1, 1]} : vector<8x15xf32> to vector<8x5xf32>
    %204 = vector.extract_strided_slice %192 {offsets = [0, 10], sizes = [8, 5], strides = [1, 1]} : vector<8x15xf32> to vector<8x5xf32>
    %205 = arith.mulf %201, %204 : vector<8x5xf32>
    %206 = arith.addf %203, %205 : vector<8x5xf32>
    %207 = math.tanh %206 : vector<8x5xf32>
    %cst_27 = arith.constant 1.000000e+00 : f32
    %208 = vector.broadcast %cst_27 : f32 to vector<8x5xf32>
    %209 = arith.subf %208, %202 : vector<8x5xf32>
    %210 = arith.mulf %209, %207 : vector<8x5xf32>
    %211 = arith.mulf %202, %171 : vector<8x5xf32>
    %212 = arith.addf %210, %211 : vector<8x5xf32>
    %213 = vector.extract_strided_slice %30 {offsets = [32, 0], sizes = [8, 15], strides = [1, 1]} : vector<64x15xf32> to vector<8x15xf32>
    %214 = vector.extract_strided_slice %212 {offsets = [0, 0], sizes = [8, 1], strides = [1, 1]} : vector<8x5xf32> to vector<8x1xf32>
    %215 = vector.broadcast %214 : vector<8x1xf32> to vector<8x15xf32>
    %216 = arith.mulf %215, %33 : vector<8x15xf32>
    %217 = arith.addf %47, %216 : vector<8x15xf32>
    %218 = vector.extract_strided_slice %212 {offsets = [0, 1], sizes = [8, 1], strides = [1, 1]} : vector<8x5xf32> to vector<8x1xf32>
    %219 = vector.broadcast %218 : vector<8x1xf32> to vector<8x15xf32>
    %220 = arith.mulf %219, %36 : vector<8x15xf32>
    %221 = arith.addf %217, %220 : vector<8x15xf32>
    %222 = vector.extract_strided_slice %212 {offsets = [0, 2], sizes = [8, 1], strides = [1, 1]} : vector<8x5xf32> to vector<8x1xf32>
    %223 = vector.broadcast %222 : vector<8x1xf32> to vector<8x15xf32>
    %224 = arith.mulf %223, %39 : vector<8x15xf32>
    %225 = arith.addf %221, %224 : vector<8x15xf32>
    %226 = vector.extract_strided_slice %212 {offsets = [0, 3], sizes = [8, 1], strides = [1, 1]} : vector<8x5xf32> to vector<8x1xf32>
    %227 = vector.broadcast %226 : vector<8x1xf32> to vector<8x15xf32>
    %228 = arith.mulf %227, %42 : vector<8x15xf32>
    %229 = arith.addf %225, %228 : vector<8x15xf32>
    %230 = vector.extract_strided_slice %212 {offsets = [0, 4], sizes = [8, 1], strides = [1, 1]} : vector<8x5xf32> to vector<8x1xf32>
    %231 = vector.broadcast %230 : vector<8x1xf32> to vector<8x15xf32>
    %232 = arith.mulf %231, %45 : vector<8x15xf32>
    %233 = arith.addf %229, %232 : vector<8x15xf32>
    %234 = vector.extract_strided_slice %213 {offsets = [0, 0], sizes = [8, 10], strides = [1, 1]} : vector<8x15xf32> to vector<8x10xf32>
    %235 = vector.extract_strided_slice %233 {offsets = [0, 0], sizes = [8, 10], strides = [1, 1]} : vector<8x15xf32> to vector<8x10xf32>
    %236 = arith.addf %234, %235 : vector<8x10xf32>
    %237 = arith.negf %236 : vector<8x10xf32>
    %238 = math.exp %237 : vector<8x10xf32>
    %cst_28 = arith.constant 1.000000e+00 : f32
    %239 = vector.broadcast %cst_28 : f32 to vector<8x10xf32>
    %240 = arith.addf %239, %238 : vector<8x10xf32>
    %241 = arith.divf %239, %240 : vector<8x10xf32>
    %242 = vector.extract_strided_slice %241 {offsets = [0, 0], sizes = [8, 5], strides = [1, 1]} : vector<8x10xf32> to vector<8x5xf32>
    %243 = vector.extract_strided_slice %241 {offsets = [0, 5], sizes = [8, 5], strides = [1, 1]} : vector<8x10xf32> to vector<8x5xf32>
    %244 = vector.extract_strided_slice %213 {offsets = [0, 10], sizes = [8, 5], strides = [1, 1]} : vector<8x15xf32> to vector<8x5xf32>
    %245 = vector.extract_strided_slice %233 {offsets = [0, 10], sizes = [8, 5], strides = [1, 1]} : vector<8x15xf32> to vector<8x5xf32>
    %246 = arith.mulf %242, %245 : vector<8x5xf32>
    %247 = arith.addf %244, %246 : vector<8x5xf32>
    %248 = math.tanh %247 : vector<8x5xf32>
    %cst_29 = arith.constant 1.000000e+00 : f32
    %249 = vector.broadcast %cst_29 : f32 to vector<8x5xf32>
    %250 = arith.subf %249, %243 : vector<8x5xf32>
    %251 = arith.mulf %250, %248 : vector<8x5xf32>
    %252 = arith.mulf %243, %212 : vector<8x5xf32>
    %253 = arith.addf %251, %252 : vector<8x5xf32>
    %254 = vector.extract_strided_slice %30 {offsets = [40, 0], sizes = [8, 15], strides = [1, 1]} : vector<64x15xf32> to vector<8x15xf32>
    %255 = vector.extract_strided_slice %253 {offsets = [0, 0], sizes = [8, 1], strides = [1, 1]} : vector<8x5xf32> to vector<8x1xf32>
    %256 = vector.broadcast %255 : vector<8x1xf32> to vector<8x15xf32>
    %257 = arith.mulf %256, %33 : vector<8x15xf32>
    %258 = arith.addf %47, %257 : vector<8x15xf32>
    %259 = vector.extract_strided_slice %253 {offsets = [0, 1], sizes = [8, 1], strides = [1, 1]} : vector<8x5xf32> to vector<8x1xf32>
    %260 = vector.broadcast %259 : vector<8x1xf32> to vector<8x15xf32>
    %261 = arith.mulf %260, %36 : vector<8x15xf32>
    %262 = arith.addf %258, %261 : vector<8x15xf32>
    %263 = vector.extract_strided_slice %253 {offsets = [0, 2], sizes = [8, 1], strides = [1, 1]} : vector<8x5xf32> to vector<8x1xf32>
    %264 = vector.broadcast %263 : vector<8x1xf32> to vector<8x15xf32>
    %265 = arith.mulf %264, %39 : vector<8x15xf32>
    %266 = arith.addf %262, %265 : vector<8x15xf32>
    %267 = vector.extract_strided_slice %253 {offsets = [0, 3], sizes = [8, 1], strides = [1, 1]} : vector<8x5xf32> to vector<8x1xf32>
    %268 = vector.broadcast %267 : vector<8x1xf32> to vector<8x15xf32>
    %269 = arith.mulf %268, %42 : vector<8x15xf32>
    %270 = arith.addf %266, %269 : vector<8x15xf32>
    %271 = vector.extract_strided_slice %253 {offsets = [0, 4], sizes = [8, 1], strides = [1, 1]} : vector<8x5xf32> to vector<8x1xf32>
    %272 = vector.broadcast %271 : vector<8x1xf32> to vector<8x15xf32>
    %273 = arith.mulf %272, %45 : vector<8x15xf32>
    %274 = arith.addf %270, %273 : vector<8x15xf32>
    %275 = vector.extract_strided_slice %254 {offsets = [0, 0], sizes = [8, 10], strides = [1, 1]} : vector<8x15xf32> to vector<8x10xf32>
    %276 = vector.extract_strided_slice %274 {offsets = [0, 0], sizes = [8, 10], strides = [1, 1]} : vector<8x15xf32> to vector<8x10xf32>
    %277 = arith.addf %275, %276 : vector<8x10xf32>
    %278 = arith.negf %277 : vector<8x10xf32>
    %279 = math.exp %278 : vector<8x10xf32>
    %cst_30 = arith.constant 1.000000e+00 : f32
    %280 = vector.broadcast %cst_30 : f32 to vector<8x10xf32>
    %281 = arith.addf %280, %279 : vector<8x10xf32>
    %282 = arith.divf %280, %281 : vector<8x10xf32>
    %283 = vector.extract_strided_slice %282 {offsets = [0, 0], sizes = [8, 5], strides = [1, 1]} : vector<8x10xf32> to vector<8x5xf32>
    %284 = vector.extract_strided_slice %282 {offsets = [0, 5], sizes = [8, 5], strides = [1, 1]} : vector<8x10xf32> to vector<8x5xf32>
    %285 = vector.extract_strided_slice %254 {offsets = [0, 10], sizes = [8, 5], strides = [1, 1]} : vector<8x15xf32> to vector<8x5xf32>
    %286 = vector.extract_strided_slice %274 {offsets = [0, 10], sizes = [8, 5], strides = [1, 1]} : vector<8x15xf32> to vector<8x5xf32>
    %287 = arith.mulf %283, %286 : vector<8x5xf32>
    %288 = arith.addf %285, %287 : vector<8x5xf32>
    %289 = math.tanh %288 : vector<8x5xf32>
    %cst_31 = arith.constant 1.000000e+00 : f32
    %290 = vector.broadcast %cst_31 : f32 to vector<8x5xf32>
    %291 = arith.subf %290, %284 : vector<8x5xf32>
    %292 = arith.mulf %291, %289 : vector<8x5xf32>
    %293 = arith.mulf %284, %253 : vector<8x5xf32>
    %294 = arith.addf %292, %293 : vector<8x5xf32>
    %295 = vector.extract_strided_slice %30 {offsets = [48, 0], sizes = [8, 15], strides = [1, 1]} : vector<64x15xf32> to vector<8x15xf32>
    %296 = vector.extract_strided_slice %294 {offsets = [0, 0], sizes = [8, 1], strides = [1, 1]} : vector<8x5xf32> to vector<8x1xf32>
    %297 = vector.broadcast %296 : vector<8x1xf32> to vector<8x15xf32>
    %298 = arith.mulf %297, %33 : vector<8x15xf32>
    %299 = arith.addf %47, %298 : vector<8x15xf32>
    %300 = vector.extract_strided_slice %294 {offsets = [0, 1], sizes = [8, 1], strides = [1, 1]} : vector<8x5xf32> to vector<8x1xf32>
    %301 = vector.broadcast %300 : vector<8x1xf32> to vector<8x15xf32>
    %302 = arith.mulf %301, %36 : vector<8x15xf32>
    %303 = arith.addf %299, %302 : vector<8x15xf32>
    %304 = vector.extract_strided_slice %294 {offsets = [0, 2], sizes = [8, 1], strides = [1, 1]} : vector<8x5xf32> to vector<8x1xf32>
    %305 = vector.broadcast %304 : vector<8x1xf32> to vector<8x15xf32>
    %306 = arith.mulf %305, %39 : vector<8x15xf32>
    %307 = arith.addf %303, %306 : vector<8x15xf32>
    %308 = vector.extract_strided_slice %294 {offsets = [0, 3], sizes = [8, 1], strides = [1, 1]} : vector<8x5xf32> to vector<8x1xf32>
    %309 = vector.broadcast %308 : vector<8x1xf32> to vector<8x15xf32>
    %310 = arith.mulf %309, %42 : vector<8x15xf32>
    %311 = arith.addf %307, %310 : vector<8x15xf32>
    %312 = vector.extract_strided_slice %294 {offsets = [0, 4], sizes = [8, 1], strides = [1, 1]} : vector<8x5xf32> to vector<8x1xf32>
    %313 = vector.broadcast %312 : vector<8x1xf32> to vector<8x15xf32>
    %314 = arith.mulf %313, %45 : vector<8x15xf32>
    %315 = arith.addf %311, %314 : vector<8x15xf32>
    %316 = vector.extract_strided_slice %295 {offsets = [0, 0], sizes = [8, 10], strides = [1, 1]} : vector<8x15xf32> to vector<8x10xf32>
    %317 = vector.extract_strided_slice %315 {offsets = [0, 0], sizes = [8, 10], strides = [1, 1]} : vector<8x15xf32> to vector<8x10xf32>
    %318 = arith.addf %316, %317 : vector<8x10xf32>
    %319 = arith.negf %318 : vector<8x10xf32>
    %320 = math.exp %319 : vector<8x10xf32>
    %cst_32 = arith.constant 1.000000e+00 : f32
    %321 = vector.broadcast %cst_32 : f32 to vector<8x10xf32>
    %322 = arith.addf %321, %320 : vector<8x10xf32>
    %323 = arith.divf %321, %322 : vector<8x10xf32>
    %324 = vector.extract_strided_slice %323 {offsets = [0, 0], sizes = [8, 5], strides = [1, 1]} : vector<8x10xf32> to vector<8x5xf32>
    %325 = vector.extract_strided_slice %323 {offsets = [0, 5], sizes = [8, 5], strides = [1, 1]} : vector<8x10xf32> to vector<8x5xf32>
    %326 = vector.extract_strided_slice %295 {offsets = [0, 10], sizes = [8, 5], strides = [1, 1]} : vector<8x15xf32> to vector<8x5xf32>
    %327 = vector.extract_strided_slice %315 {offsets = [0, 10], sizes = [8, 5], strides = [1, 1]} : vector<8x15xf32> to vector<8x5xf32>
    %328 = arith.mulf %324, %327 : vector<8x5xf32>
    %329 = arith.addf %326, %328 : vector<8x5xf32>
    %330 = math.tanh %329 : vector<8x5xf32>
    %cst_33 = arith.constant 1.000000e+00 : f32
    %331 = vector.broadcast %cst_33 : f32 to vector<8x5xf32>
    %332 = arith.subf %331, %325 : vector<8x5xf32>
    %333 = arith.mulf %332, %330 : vector<8x5xf32>
    %334 = arith.mulf %325, %294 : vector<8x5xf32>
    %335 = arith.addf %333, %334 : vector<8x5xf32>
    %336 = vector.extract_strided_slice %30 {offsets = [56, 0], sizes = [8, 15], strides = [1, 1]} : vector<64x15xf32> to vector<8x15xf32>
    %337 = vector.extract_strided_slice %335 {offsets = [0, 0], sizes = [8, 1], strides = [1, 1]} : vector<8x5xf32> to vector<8x1xf32>
    %338 = vector.broadcast %337 : vector<8x1xf32> to vector<8x15xf32>
    %339 = arith.mulf %338, %33 : vector<8x15xf32>
    %340 = arith.addf %47, %339 : vector<8x15xf32>
    %341 = vector.extract_strided_slice %335 {offsets = [0, 1], sizes = [8, 1], strides = [1, 1]} : vector<8x5xf32> to vector<8x1xf32>
    %342 = vector.broadcast %341 : vector<8x1xf32> to vector<8x15xf32>
    %343 = arith.mulf %342, %36 : vector<8x15xf32>
    %344 = arith.addf %340, %343 : vector<8x15xf32>
    %345 = vector.extract_strided_slice %335 {offsets = [0, 2], sizes = [8, 1], strides = [1, 1]} : vector<8x5xf32> to vector<8x1xf32>
    %346 = vector.broadcast %345 : vector<8x1xf32> to vector<8x15xf32>
    %347 = arith.mulf %346, %39 : vector<8x15xf32>
    %348 = arith.addf %344, %347 : vector<8x15xf32>
    %349 = vector.extract_strided_slice %335 {offsets = [0, 3], sizes = [8, 1], strides = [1, 1]} : vector<8x5xf32> to vector<8x1xf32>
    %350 = vector.broadcast %349 : vector<8x1xf32> to vector<8x15xf32>
    %351 = arith.mulf %350, %42 : vector<8x15xf32>
    %352 = arith.addf %348, %351 : vector<8x15xf32>
    %353 = vector.extract_strided_slice %335 {offsets = [0, 4], sizes = [8, 1], strides = [1, 1]} : vector<8x5xf32> to vector<8x1xf32>
    %354 = vector.broadcast %353 : vector<8x1xf32> to vector<8x15xf32>
    %355 = arith.mulf %354, %45 : vector<8x15xf32>
    %356 = arith.addf %352, %355 : vector<8x15xf32>
    %357 = vector.extract_strided_slice %336 {offsets = [0, 0], sizes = [8, 10], strides = [1, 1]} : vector<8x15xf32> to vector<8x10xf32>
    %358 = vector.extract_strided_slice %356 {offsets = [0, 0], sizes = [8, 10], strides = [1, 1]} : vector<8x15xf32> to vector<8x10xf32>
    %359 = arith.addf %357, %358 : vector<8x10xf32>
    %360 = arith.negf %359 : vector<8x10xf32>
    %361 = math.exp %360 : vector<8x10xf32>
    %cst_34 = arith.constant 1.000000e+00 : f32
    %362 = vector.broadcast %cst_34 : f32 to vector<8x10xf32>
    %363 = arith.addf %362, %361 : vector<8x10xf32>
    %364 = arith.divf %362, %363 : vector<8x10xf32>
    %365 = vector.extract_strided_slice %364 {offsets = [0, 0], sizes = [8, 5], strides = [1, 1]} : vector<8x10xf32> to vector<8x5xf32>
    %366 = vector.extract_strided_slice %364 {offsets = [0, 5], sizes = [8, 5], strides = [1, 1]} : vector<8x10xf32> to vector<8x5xf32>
    %367 = vector.extract_strided_slice %336 {offsets = [0, 10], sizes = [8, 5], strides = [1, 1]} : vector<8x15xf32> to vector<8x5xf32>
    %368 = vector.extract_strided_slice %356 {offsets = [0, 10], sizes = [8, 5], strides = [1, 1]} : vector<8x15xf32> to vector<8x5xf32>
    %369 = arith.mulf %365, %368 : vector<8x5xf32>
    %370 = arith.addf %367, %369 : vector<8x5xf32>
    %371 = math.tanh %370 : vector<8x5xf32>
    %cst_35 = arith.constant 1.000000e+00 : f32
    %372 = vector.broadcast %cst_35 : f32 to vector<8x5xf32>
    %373 = arith.subf %372, %366 : vector<8x5xf32>
    %374 = arith.mulf %373, %371 : vector<8x5xf32>
    %375 = arith.mulf %366, %335 : vector<8x5xf32>
    %376 = arith.addf %374, %375 : vector<8x5xf32>
    %377 = arith.mulf %376, %24 : vector<8x5xf32>
    %cst_36 = arith.constant dense<0.000000e+00> : vector<8xf32>
    %378 = vector.multi_reduction <add>, %377, %cst_36 [1] : vector<8x5xf32> to vector<8xf32>
    %379 = vector.shape_cast %378 : vector<8xf32> to vector<8x1xf32>
    %c0_37 = arith.constant 0 : index
    %380 = memref.load %arg2[%c0_37] : memref<1xf32, #tpu.memory_space<smem>>
    %381 = vector.broadcast %380 : f32 to vector<8x1xf32>
    %382 = arith.mulf %379, %381 : vector<8x1xf32>
    %383 = arith.negf %382 : vector<8x1xf32>
    %384 = math.exp %383 : vector<8x1xf32>
    %cst_38 = arith.constant 1.000000e+00 : f32
    %385 = vector.broadcast %cst_38 : f32 to vector<8x1xf32>
    %386 = arith.addf %385, %384 : vector<8x1xf32>
    %387 = arith.divf %385, %386 : vector<8x1xf32>
    %cst_39 = arith.constant 0.00999999977 : f32
    %cst_40 = arith.constant 9.900000e-01 : f32
    %388 = vector.broadcast %cst_39 : f32 to vector<8x1xf32>
    %389 = arith.maximumf %388, %387 : vector<8x1xf32>
    %390 = vector.broadcast %cst_40 : f32 to vector<8x1xf32>
    %391 = arith.minimumf %390, %389 : vector<8x1xf32>
    %c0_41 = arith.constant 0 : index
    %c0_42 = arith.constant 0 : index
    %392 = vector.load %arg3[%c0_41, %c0_42] : memref<8x1xf32, #tpu.memory_space<vmem>>, vector<8x1xf32>
    tpu.vector_store %arg3[%c0_41, %c0_42], %391 {strides = array<i32>} : memref<8x1xf32, #tpu.memory_space<vmem>>, vector<8x1xf32>,
    return
  }
}

</mosaic_0001>

<llo_original>
// kernel: forward.1
$region0: #{forward.1}
  #allocation0 [shape = 'u32[]', space=smem, size = 0x4, offset = 0x4, fixed_abs, tag = 'smem constant byte address 0x4 - core index']
  #allocation1 [shape = 'u32[144,128]{1,0:T(1,128)}', space=vmem, size = 0x12000, scoped, tag = 'internal scratch']
  #allocation2 [shape = 'f32[1]{0:T(128)S(6)}', space=smem, size = 0x200, scoped, tag = 'scoped memory for forward.1']
  %s0 = inlined_call_operand.vmem [shape: f32[136,8], index: 0, kind: input, shape index: {}]
  %s1 = inlined_call_operand.vmem [shape: f32[80,15], index: 1, kind: input, shape index: {}]
  %s2 = inlined_call_operand.<no memory space> [shape: f32[1], index: 2, kind: input, shape index: {}]
  %s3 = inlined_call_operand.vmem [shape: f32[8,1], index: 3, kind: output, shape index: {}]
  %s4 = sld [smem:[#allocation0]]
  $region22: #{forward.1} parent=0
    _
  %s6 = ssub.s32 1, %s4
  %s7 = scalar_select 0, %s6, %s4
  %8 = sst [smem:[#allocation2]] %s2
  // Predicated region
  $region2: #{forward.1} parent=0 // pred_check
    _
  $region3: #{forward.1} parent=0 // pred_check_branch
    %10 = sbr.rel (0) target = $region5
  $region4: #{forward.1} parent=0 // pred_region
    _
  $region5: #{forward.1} parent=0 // pred_fallthru
    _
  // Predicated region
  $region6: #{forward.1} parent=0 // pred_check
    _
  $region7: #{forward.1} parent=0 // pred_check_branch
    %12 = sbr.rel (0) target = $region9
  $region8: #{forward.1} parent=0 // pred_region
    _
  $region9: #{forward.1} parent=0 // pred_fallthru
    _
  // Predicated region
  $region10: #{forward.1} parent=0 // pred_check
    _
  $region11: #{forward.1} parent=0 // pred_check_branch
    %14 = sbr.rel (0) target = $region13
  $region12: #{forward.1} parent=0 // pred_region
    _
  $region13: #{forward.1} parent=0 // pred_fallthru
    _
  %v15 = vld [vmem:[%s1] sm:$0xff]
  %v16 = vld [vmem:[%s1 + $0x8] sm:$0xff]
  %v17 = vld [vmem:[%s1 + $0x10] sm:$0x7f]
  %v18 = vld [vmem:[%s1 + $0x18] sm:$0xff]
  %v19 = vld [vmem:[%s1 + $0x20] sm:$0x7f]
  %v20 = vld [vmem:[%s1 + $0x28] sm:$0xff]
  %v21 = vld [vmem:[%s1 + $0x30] sm:$0x7f]
  %v22 = vld [vmem:[%s1 + $0x38] sm:$0x7]
  %v23 = vld [vmem:[%s1 + $0x40] sm:$0x1f]
  %v24 = vld [vmem:[%s1 + $0x48] sm:$0x1]
  %v25 = vld [vmem:[%s1 + $0x49] sm:$0x1]
  %v26 = vld [vmem:[%s1 + $0x4a] sm:$0x1]
  %v27 = vld [vmem:[%s1 + $0x4b] sm:$0x1]
  %v28 = vld [vmem:[%s1 + $0x4c] sm:$0x1]
  %v29 = vld [vmem:[%s0] sm:$0xff]
  %v30 = vld [vmem:[%s0 + $0x8] sm:$0xff]
  %v31 = vld [vmem:[%s0 + $0x10] sm:$0xff]
  %v32 = vld [vmem:[%s0 + $0x18] sm:$0xff]
  %v33 = vld [vmem:[%s0 + $0x20] sm:$0xff]
  %v34 = vld [vmem:[%s0 + $0x28] sm:$0xff]
  %v35 = vld [vmem:[%s0 + $0x30] sm:$0xff]
  %v36 = vld [vmem:[%s0 + $0x38] sm:$0xff]
  %v37 = vld [vmem:[%s0 + $0x40] sm:$0xff]
  %v38 = vlaneseq
  %v39 = vshrl.u32 %v38, 7
  %v40 = vsub.s32 0, %v39
  %v41 = vrot.slane %v24, %v40
  %vm42 = vcmask 64512
  %v44 = vsel %vm42, %v29, 0
  %v47 = vsel %vm42, %v30, 0
  %v50 = vsel %vm42, %v31, 0
  %v53 = vsel %vm42, %v32, 0
  %v56 = vsel %vm42, %v33, 0
  %v59 = vsel %vm42, %v34, 0
  %v62 = vsel %vm42, %v35, 0
  %v65 = vsel %vm42, %v36, 0
  %v68 = vsel %vm42, %v37, 0
  %70 = vmatprep.subr.mxu0 0.0
  %71 = vmatpush1.msra.mxu0 0.0
  %72 = vmatprep.subr.mxu0 0.0
  %73 = vmatpush1.msra.mxu0 0.0
  %74 = vmatprep.subr.mxu0 0.0
  %75 = vmatpush1.msra.mxu0 0.0
  %76 = vmatprep.subr.mxu0 0.0
  %77 = vmatpush1.msra.mxu0 0.0
  %78 = vmatprep.subr.mxu0 0.0
  %79 = vmatpush1.msra.mxu0 0.0
  %80 = vmatprep.subr.mxu0 0.0
  %81 = vmatpush1.msra.mxu0 0.0
  %82 = vmatprep.subr.mxu0 0.0
  %83 = vmatpush1.msra.mxu0 0.0
  %84 = vmatprep.subr.mxu0 0.0
  %85 = vmatpush1.msra.mxu0 0.0
  %86 = vmatprep.subr.mxu0 0.0
  %87 = vmatpush1.msra.mxu0 0.0
  %88 = vmatprep.subr.mxu0 0.0
  %89 = vmatpush1.msra.mxu0 0.0
  %90 = vmatprep.subr.mxu0 0.0
  %91 = vmatpush1.msra.mxu0 0.0
  %92 = vmatprep.subr.mxu0 0.0
  %93 = vmatpush1.msra.mxu0 0.0
  %94 = vmatprep.subr.mxu0 0.0
  %95 = vmatpush1.msra.mxu0 0.0
  %96 = vmatprep.subr.mxu0 0.0
  %97 = vmatpush1.msra.mxu0 0.0
  %98 = vmatprep.subr.mxu0 0.0
  %99 = vmatpush1.msra.mxu0 0.0
  %100 = vmatprep.subr.mxu0 0.0
  %101 = vmatpush1.msra.mxu0 %v15
  %102 = vmatprep.subr.mxu0 0.0
  %103 = vmatpush2.msra.mxu0 0.0
  %104 = vmatprep.subr.mxu0 0.0
  %105 = vmatpush2.msra.mxu0 0.0
  %106 = vmatprep.subr.mxu0 0.0
  %107 = vmatpush2.msra.mxu0 0.0
  %108 = vmatprep.subr.mxu0 0.0
  %109 = vmatpush2.msra.mxu0 0.0
  %110 = vmatprep.subr.mxu0 0.0
  %111 = vmatpush2.msra.mxu0 0.0
  %112 = vmatprep.subr.mxu0 0.0
  %113 = vmatpush2.msra.mxu0 0.0
  %114 = vmatprep.subr.mxu0 0.0
  %115 = vmatpush2.msra.mxu0 0.0
  %116 = vmatprep.subr.mxu0 0.0
  %117 = vmatpush2.msra.mxu0 0.0
  %118 = vmatprep.subr.mxu0 0.0
  %119 = vmatpush2.msra.mxu0 0.0
  %120 = vmatprep.subr.mxu0 0.0
  %121 = vmatpush2.msra.mxu0 0.0
  %122 = vmatprep.subr.mxu0 0.0
  %123 = vmatpush2.msra.mxu0 0.0
  %124 = vmatprep.subr.mxu0 0.0
  %125 = vmatpush2.msra.mxu0 0.0
  %126 = vmatprep.subr.mxu0 0.0
  %127 = vmatpush2.msra.mxu0 0.0
  %128 = vmatprep.subr.mxu0 0.0
  %129 = vmatpush2.msra.mxu0 0.0
  %130 = vmatprep.subr.mxu0 0.0
  %131 = vmatpush2.msra.mxu0 0.0
  %132 = vmatprep.subr.mxu0 0.0
  %133 = vmatpush2.msra.mxu0 0.0
  %134 = vmatprep.mubr.f32.mxu0 0.0
  %135 = vmatmul.mubr.f32.gmra.mxu0 %v44
  %v136 = vpop.f32.mrf.mxu0
  %v137 = vadd.f32 %v41, %v136
  %v138 = vpop.f32.mrf.mxu0
  %139 = vmatprep.mubr.f32.mxu0 0.0
  %140 = vmatmul.mubr.f32.gmra.mxu0 %v47
  %v141 = vpop.f32.mrf.mxu0
  %v142 = vadd.f32 %v41, %v141
  %v143 = vpop.f32.mrf.mxu0
  %144 = vmatprep.mubr.f32.mxu0 0.0
  %145 = vmatmul.mubr.f32.gmra.mxu0 %v50
  %v146 = vpop.f32.mrf.mxu0
  %v147 = vadd.f32 %v41, %v146
  %v148 = vpop.f32.mrf.mxu0
  %149 = vmatprep.mubr.f32.mxu0 0.0
  %150 = vmatmul.mubr.f32.gmra.mxu0 %v53
  %v151 = vpop.f32.mrf.mxu0
  %v152 = vadd.f32 %v41, %v151
  %v153 = vpop.f32.mrf.mxu0
  %154 = vmatprep.mubr.f32.mxu0 0.0
  %155 = vmatmul.mubr.f32.gmra.mxu0 %v56
  %v156 = vpop.f32.mrf.mxu0
  %v157 = vadd.f32 %v41, %v156
  %v158 = vpop.f32.mrf.mxu0
  %159 = vmatprep.mubr.f32.mxu0 0.0
  %160 = vmatmul.mubr.f32.gmra.mxu0 %v59
  %v161 = vpop.f32.mrf.mxu0
  %v162 = vadd.f32 %v41, %v161
  %v163 = vpop.f32.mrf.mxu0
  %164 = vmatprep.mubr.f32.mxu0 0.0
  %165 = vmatmul.mubr.f32.gmra.mxu0 %v62
  %v166 = vpop.f32.mrf.mxu0
  %v167 = vadd.f32 %v41, %v166
  %v168 = vpop.f32.mrf.mxu0
  %169 = vmatprep.mubr.f32.mxu0 0.0
  %170 = vmatmul.mubr.f32.gmra.mxu0 %v65
  %v171 = vpop.f32.mrf.mxu0
  %v172 = vadd.f32 %v41, %v171
  %v173 = vpop.f32.mrf.mxu0
  %174 = vmatprep.mubr.f32.mxu0 0.0
  %175 = vmatmul.mubr.f32.gmra.mxu0 %v68
  %v176 = vpop.f32.mrf.mxu0
  %v177 = vadd.f32 %v41, %v176
  %v178 = vpop.f32.mrf.mxu0
  %179 = vdwg.mxu0
  %v180 = vtanh.pop %v137
  %v181 = vtanh.pop %v142
  %v182 = vtanh.pop %v147
  %v183 = vtanh.pop %v152
  %v184 = vtanh.pop %v157
  %v185 = vtanh.pop %v162
  %v186 = vtanh.pop %v167
  %v187 = vtanh.pop %v172
  %v188 = vtanh.pop %v177
  %v189 = vlaneseq
  %v190 = vshrl.u32 %v189, 7
  %v191 = vsub.s32 0, %v190
  %v192 = vrot.slane %v25, %v191
  %vm193 = vcmask 121856
  %v195 = vsel %vm193, %v180, 0
  %v198 = vsel %vm193, %v181, 0
  %v201 = vsel %vm193, %v182, 0
  %v204 = vsel %vm193, %v183, 0
  %v207 = vsel %vm193, %v184, 0
  %v210 = vsel %vm193, %v185, 0
  %v213 = vsel %vm193, %v186, 0
  %v216 = vsel %vm193, %v187, 0
  %v219 = vsel %vm193, %v188, 0
  %vm221 = vcmask 1046528
  %v223 = vsel %vm221, %v17, 0
  %225 = vmatprep.subr.mxu0 0.0
  %226 = vmatpush1.msra.mxu0 0.0
  %227 = vmatprep.subr.mxu0 0.0
  %228 = vmatpush1.msra.mxu0 0.0
  %229 = vmatprep.subr.mxu0 0.0
  %230 = vmatpush1.msra.mxu0 0.0
  %231 = vmatprep.subr.mxu0 0.0
  %232 = vmatpush1.msra.mxu0 0.0
  %233 = vmatprep.subr.mxu0 0.0
  %234 = vmatpush1.msra.mxu0 0.0
  %235 = vmatprep.subr.mxu0 0.0
  %236 = vmatpush1.msra.mxu0 0.0
  %237 = vmatprep.subr.mxu0 0.0
  %238 = vmatpush1.msra.mxu0 0.0
  %239 = vmatprep.subr.mxu0 0.0
  %240 = vmatpush1.msra.mxu0 0.0
  %241 = vmatprep.subr.mxu0 0.0
  %242 = vmatpush1.msra.mxu0 0.0
  %243 = vmatprep.subr.mxu0 0.0
  %244 = vmatpush1.msra.mxu0 0.0
  %245 = vmatprep.subr.mxu0 0.0
  %246 = vmatpush1.msra.mxu0 0.0
  %247 = vmatprep.subr.mxu0 0.0
  %248 = vmatpush1.msra.mxu0 0.0
  %249 = vmatprep.subr.mxu0 0.0
  %250 = vmatpush1.msra.mxu0 0.0
  %251 = vmatprep.subr.mxu0 0.0
  %252 = vmatpush1.msra.mxu0 0.0
  %253 = vmatprep.subr.mxu0 0.0
  %254 = vmatpush1.msra.mxu0 %v223
  %255 = vmatprep.subr.mxu0 0.0
  %256 = vmatpush1.msra.mxu0 %v16
  %257 = vmatprep.subr.mxu0 0.0
  %258 = vmatpush2.msra.mxu0 0.0
  %259 = vmatprep.subr.mxu0 0.0
  %260 = vmatpush2.msra.mxu0 0.0
  %261 = vmatprep.subr.mxu0 0.0
  %262 = vmatpush2.msra.mxu0 0.0
  %263 = vmatprep.subr.mxu0 0.0
  %264 = vmatpush2.msra.mxu0 0.0
  %265 = vmatprep.subr.mxu0 0.0
  %266 = vmatpush2.msra.mxu0 0.0
  %267 = vmatprep.subr.mxu0 0.0
  %268 = vmatpush2.msra.mxu0 0.0
  %269 = vmatprep.subr.mxu0 0.0
  %270 = vmatpush2.msra.mxu0 0.0
  %271 = vmatprep.subr.mxu0 0.0
  %272 = vmatpush2.msra.mxu0 0.0
  %273 = vmatprep.subr.mxu0 0.0
  %274 = vmatpush2.msra.mxu0 0.0
  %275 = vmatprep.subr.mxu0 0.0
  %276 = vmatpush2.msra.mxu0 0.0
  %277 = vmatprep.subr.mxu0 0.0
  %278 = vmatpush2.msra.mxu0 0.0
  %279 = vmatprep.subr.mxu0 0.0
  %280 = vmatpush2.msra.mxu0 0.0
  %281 = vmatprep.subr.mxu0 0.0
  %282 = vmatpush2.msra.mxu0 0.0
  %283 = vmatprep.subr.mxu0 0.0
  %284 = vmatpush2.msra.mxu0 0.0
  %285 = vmatprep.subr.mxu0 0.0
  %286 = vmatpush2.msra.mxu0 0.0
  %287 = vmatprep.subr.mxu0 0.0
  %288 = vmatpush2.msra.mxu0 0.0
  %289 = vmatprep.mubr.f32.mxu0 0.0
  %290 = vmatmul.mubr.f32.gmra.mxu0 %v195
  %v291 = vpop.f32.mrf.mxu0
  %v292 = vadd.f32 %v192, %v291
  %v293 = vpop.f32.mrf.mxu0
  %294 = vmatprep.mubr.f32.mxu0 0.0
  %295 = vmatmul.mubr.f32.gmra.mxu0 %v198
  %v296 = vpop.f32.mrf.mxu0
  %v297 = vadd.f32 %v192, %v296
  %v298 = vpop.f32.mrf.mxu0
  %299 = vmatprep.mubr.f32.mxu0 0.0
  %300 = vmatmul.mubr.f32.gmra.mxu0 %v201
  %v301 = vpop.f32.mrf.mxu0
  %v302 = vadd.f32 %v192, %v301
  %v303 = vpop.f32.mrf.mxu0
  %304 = vmatprep.mubr.f32.mxu0 0.0
  %305 = vmatmul.mubr.f32.gmra.mxu0 %v204
  %v306 = vpop.f32.mrf.mxu0
  %v307 = vadd.f32 %v192, %v306
  %v308 = vpop.f32.mrf.mxu0
  %309 = vmatprep.mubr.f32.mxu0 0.0
  %310 = vmatmul.mubr.f32.gmra.mxu0 %v207
  %v311 = vpop.f32.mrf.mxu0
  %v312 = vadd.f32 %v192, %v311
  %v313 = vpop.f32.mrf.mxu0
  %314 = vmatprep.mubr.f32.mxu0 0.0
  %315 = vmatmul.mubr.f32.gmra.mxu0 %v210
  %v316 = vpop.f32.mrf.mxu0
  %v317 = vadd.f32 %v192, %v316
  %v318 = vpop.f32.mrf.mxu0
  %319 = vmatprep.mubr.f32.mxu0 0.0
  %320 = vmatmul.mubr.f32.gmra.mxu0 %v213
  %v321 = vpop.f32.mrf.mxu0
  %v322 = vadd.f32 %v192, %v321
  %v323 = vpop.f32.mrf.mxu0
  %324 = vmatprep.mubr.f32.mxu0 0.0
  %325 = vmatmul.mubr.f32.gmra.mxu0 %v216
  %v326 = vpop.f32.mrf.mxu0
  %v327 = vadd.f32 %v192, %v326
  %v328 = vpop.f32.mrf.mxu0
  %329 = vmatprep.mubr.f32.mxu0 0.0
  %330 = vmatmul.mubr.f32.gmra.mxu0 %v219
  %v331 = vpop.f32.mrf.mxu0
  %v332 = vadd.f32 %v192, %v331
  %v333 = vpop.f32.mrf.mxu0
  %334 = vdwg.mxu0
  %v335 = vtanh.pop %v292
  %v336 = vtanh.pop %v297
  %v337 = vtanh.pop %v302
  %v338 = vtanh.pop %v307
  %v339 = vtanh.pop %v312
  %v340 = vtanh.pop %v317
  %v341 = vtanh.pop %v322
  %v342 = vtanh.pop %v327
  %v343 = vtanh.pop %v332
  %v344 = vlaneseq
  %v345 = vshrl.u32 %v344, 7
  %v346 = vsub.s32 0, %v345
  %v347 = vrot.slane %v26, %v346
  %v349 = vsel %vm193, %v343, 0
  %v352 = vsel %vm221, %v19, 0
  %354 = vmatprep.subr.mxu0 0.0
  %355 = vmatpush1.msra.mxu0 0.0
  %356 = vmatprep.subr.mxu0 0.0
  %357 = vmatpush1.msra.mxu0 0.0
  %358 = vmatprep.subr.mxu0 0.0
  %359 = vmatpush1.msra.mxu0 0.0
  %360 = vmatprep.subr.mxu0 0.0
  %361 = vmatpush1.msra.mxu0 0.0
  %362 = vmatprep.subr.mxu0 0.0
  %363 = vmatpush1.msra.mxu0 0.0
  %364 = vmatprep.subr.mxu0 0.0
  %365 = vmatpush1.msra.mxu0 0.0
  %366 = vmatprep.subr.mxu0 0.0
  %367 = vmatpush1.msra.mxu0 0.0
  %368 = vmatprep.subr.mxu0 0.0
  %369 = vmatpush1.msra.mxu0 0.0
  %370 = vmatprep.subr.mxu0 0.0
  %371 = vmatpush1.msra.mxu0 0.0
  %372 = vmatprep.subr.mxu0 0.0
  %373 = vmatpush1.msra.mxu0 0.0
  %374 = vmatprep.subr.mxu0 0.0
  %375 = vmatpush1.msra.mxu0 0.0
  %376 = vmatprep.subr.mxu0 0.0
  %377 = vmatpush1.msra.mxu0 0.0
  %378 = vmatprep.subr.mxu0 0.0
  %379 = vmatpush1.msra.mxu0 0.0
  %380 = vmatprep.subr.mxu0 0.0
  %381 = vmatpush1.msra.mxu0 0.0
  %382 = vmatprep.subr.mxu0 0.0
  %383 = vmatpush1.msra.mxu0 %v352
  %384 = vmatprep.subr.mxu0 0.0
  %385 = vmatpush1.msra.mxu0 %v18
  %386 = vmatprep.subr.mxu0 0.0
  %387 = vmatpush2.msra.mxu0 0.0
  %388 = vmatprep.subr.mxu0 0.0
  %389 = vmatpush2.msra.mxu0 0.0
  %390 = vmatprep.subr.mxu0 0.0
  %391 = vmatpush2.msra.mxu0 0.0
  %392 = vmatprep.subr.mxu0 0.0
  %393 = vmatpush2.msra.mxu0 0.0
  %394 = vmatprep.subr.mxu0 0.0
  %395 = vmatpush2.msra.mxu0 0.0
  %396 = vmatprep.subr.mxu0 0.0
  %397 = vmatpush2.msra.mxu0 0.0
  %398 = vmatprep.subr.mxu0 0.0
  %399 = vmatpush2.msra.mxu0 0.0
  %400 = vmatprep.subr.mxu0 0.0
  %401 = vmatpush2.msra.mxu0 0.0
  %402 = vmatprep.subr.mxu0 0.0
  %403 = vmatpush2.msra.mxu0 0.0
  %404 = vmatprep.subr.mxu0 0.0
  %405 = vmatpush2.msra.mxu0 0.0
  %406 = vmatprep.subr.mxu0 0.0
  %407 = vmatpush2.msra.mxu0 0.0
  %408 = vmatprep.subr.mxu0 0.0
  %409 = vmatpush2.msra.mxu0 0.0
  %410 = vmatprep.subr.mxu0 0.0
  %411 = vmatpush2.msra.mxu0 0.0
  %412 = vmatprep.subr.mxu0 0.0
  %413 = vmatpush2.msra.mxu0 0.0
  %414 = vmatprep.subr.mxu0 0.0
  %415 = vmatpush2.msra.mxu0 0.0
  %416 = vmatprep.subr.mxu0 0.0
  %417 = vmatpush2.msra.mxu0 0.0
  %418 = vmatprep.mubr.f32.mxu0 0.0
  %419 = vmatmul.mubr.f32.gmra.mxu0 %v349
  %v420 = vpop.f32.mrf.mxu0
  %v421 = vadd.f32 %v347, %v420
  %v422 = vpop.f32.mrf.mxu0
  %423 = vdwg.mxu0
  %v424 = vld [vmem:[%s0 + $0x48] sm:$0xff]
  %v425 = vld [vmem:[%s0 + $0x50] sm:$0xff]
  %v426 = vld [vmem:[%s0 + $0x58] sm:$0xff]
  %v427 = vld [vmem:[%s0 + $0x60] sm:$0xff]
  %v428 = vld [vmem:[%s0 + $0x68] sm:$0xff]
  %v429 = vld [vmem:[%s0 + $0x70] sm:$0xff]
  %v430 = vld [vmem:[%s0 + $0x78] sm:$0xff]
  %v431 = vld [vmem:[%s0 + $0x80] sm:$0xff]
  %vm432 = vcmask 23552
  %v434 = vsel %vm432, %v424, 0
  %v437 = vsel %vm432, %v425, 0
  %v440 = vsel %vm432, %v426, 0
  %v443 = vsel %vm432, %v427, 0
  %v446 = vsel %vm432, %v428, 0
  %v449 = vsel %vm432, %v429, 0
  %v452 = vsel %vm432, %v430, 0
  %v455 = vsel %vm432, %v431, 0
  %vm457 = vcmask 1042432
  %v459 = vsel %vm457, %v22, 0
  %461 = vmatprep.subr.mxu0 0.0
  %462 = vmatpush1.msra.mxu0 0.0
  %463 = vmatprep.subr.mxu0 0.0
  %464 = vmatpush1.msra.mxu0 0.0
  %465 = vmatprep.subr.mxu0 0.0
  %466 = vmatpush1.msra.mxu0 0.0
  %467 = vmatprep.subr.mxu0 0.0
  %468 = vmatpush1.msra.mxu0 0.0
  %469 = vmatprep.subr.mxu0 0.0
  %470 = vmatpush1.msra.mxu0 0.0
  %471 = vmatprep.subr.mxu0 0.0
  %472 = vmatpush1.msra.mxu0 0.0
  %473 = vmatprep.subr.mxu0 0.0
  %474 = vmatpush1.msra.mxu0 0.0
  %475 = vmatprep.subr.mxu0 0.0
  %476 = vmatpush1.msra.mxu0 0.0
  %477 = vmatprep.subr.mxu0 0.0
  %478 = vmatpush1.msra.mxu0 0.0
  %479 = vmatprep.subr.mxu0 0.0
  %480 = vmatpush1.msra.mxu0 0.0
  %481 = vmatprep.subr.mxu0 0.0
  %482 = vmatpush1.msra.mxu0 0.0
  %483 = vmatprep.subr.mxu0 0.0
  %484 = vmatpush1.msra.mxu0 0.0
  %485 = vmatprep.subr.mxu0 0.0
  %486 = vmatpush1.msra.mxu0 0.0
  %487 = vmatprep.subr.mxu0 0.0
  %488 = vmatpush1.msra.mxu0 0.0
  %489 = vmatprep.subr.mxu0 0.0
  %490 = vmatpush1.msra.mxu0 0.0
  %491 = vmatprep.subr.mxu0 0.0
  %492 = vmatpush1.msra.mxu0 %v459
  %493 = vmatprep.subr.mxu0 0.0
  %494 = vmatpush2.msra.mxu0 0.0
  %495 = vmatprep.subr.mxu0 0.0
  %496 = vmatpush2.msra.mxu0 0.0
  %497 = vmatprep.subr.mxu0 0.0
  %498 = vmatpush2.msra.mxu0 0.0
  %499 = vmatprep.subr.mxu0 0.0
  %500 = vmatpush2.msra.mxu0 0.0
  %501 = vmatprep.subr.mxu0 0.0
  %502 = vmatpush2.msra.mxu0 0.0
  %503 = vmatprep.subr.mxu0 0.0
  %504 = vmatpush2.msra.mxu0 0.0
  %505 = vmatprep.subr.mxu0 0.0
  %506 = vmatpush2.msra.mxu0 0.0
  %507 = vmatprep.subr.mxu0 0.0
  %508 = vmatpush2.msra.mxu0 0.0
  %509 = vmatprep.subr.mxu0 0.0
  %510 = vmatpush2.msra.mxu0 0.0
  %511 = vmatprep.subr.mxu0 0.0
  %512 = vmatpush2.msra.mxu0 0.0
  %513 = vmatprep.subr.mxu0 0.0
  %514 = vmatpush2.msra.mxu0 0.0
  %515 = vmatprep.subr.mxu0 0.0
  %516 = vmatpush2.msra.mxu0 0.0
  %517 = vmatprep.subr.mxu0 0.0
  %518 = vmatpush2.msra.mxu0 0.0
  %519 = vmatprep.subr.mxu0 0.0
  %520 = vmatpush2.msra.mxu0 0.0
  %521 = vmatprep.subr.mxu0 0.0
  %522 = vmatpush2.msra.mxu0 0.0
  %523 = vmatprep.subr.mxu0 0.0
  %524 = vmatpush2.msra.mxu0 0.0
  %525 = vmatprep.mubr.f32.mxu0 0.0
  %526 = vmatmul.mubr.f32.gmra.mxu0 %v434
  %v527 = vpop.f32.mrf.mxu0
  %v528 = vadd.f32 0.0, %v527
  %v529 = vpop.f32.mrf.mxu0
  %530 = vmatprep.mubr.f32.mxu0 0.0
  %531 = vmatmul.mubr.f32.gmra.mxu0 %v437
  %v532 = vpop.f32.mrf.mxu0
  %v533 = vadd.f32 0.0, %v532
  %v534 = vpop.f32.mrf.mxu0
  %535 = vmatprep.mubr.f32.mxu0 0.0
  %536 = vmatmul.mubr.f32.gmra.mxu0 %v440
  %v537 = vpop.f32.mrf.mxu0
  %v538 = vadd.f32 0.0, %v537
  %v539 = vpop.f32.mrf.mxu0
  %540 = vmatprep.mubr.f32.mxu0 0.0
  %541 = vmatmul.mubr.f32.gmra.mxu0 %v443
  %v542 = vpop.f32.mrf.mxu0
  %v543 = vadd.f32 0.0, %v542
  %v544 = vpop.f32.mrf.mxu0
  %545 = vmatprep.mubr.f32.mxu0 0.0
  %546 = vmatmul.mubr.f32.gmra.mxu0 %v446
  %v547 = vpop.f32.mrf.mxu0
  %v548 = vadd.f32 0.0, %v547
  %v549 = vpop.f32.mrf.mxu0
  %550 = vmatprep.mubr.f32.mxu0 0.0
  %551 = vmatmul.mubr.f32.gmra.mxu0 %v449
  %v552 = vpop.f32.mrf.mxu0
  %v553 = vadd.f32 0.0, %v552
  %v554 = vpop.f32.mrf.mxu0
  %555 = vmatprep.mubr.f32.mxu0 0.0
  %556 = vmatmul.mubr.f32.gmra.mxu0 %v452
  %v557 = vpop.f32.mrf.mxu0
  %v558 = vadd.f32 0.0, %v557
  %v559 = vpop.f32.mrf.mxu0
  %560 = vmatprep.mubr.f32.mxu0 0.0
  %561 = vmatmul.mubr.f32.gmra.mxu0 %v455
  %v562 = vpop.f32.mrf.mxu0
  %v563 = vadd.f32 0.0, %v562
  %v564 = vpop.f32.mrf.mxu0
  %565 = vdwg.mxu0
  %v567 = vsel %vm193, %v335, 0
  %v570 = vsel %vm193, %v336, 0
  %v573 = vsel %vm193, %v337, 0
  %v576 = vsel %vm193, %v338, 0
  %v579 = vsel %vm193, %v339, 0
  %v582 = vsel %vm193, %v340, 0
  %v585 = vsel %vm193, %v341, 0
  %v588 = vsel %vm193, %v342, 0
  %v591 = vsel %vm221, %v21, 0
  %593 = vmatprep.subr.mxu0 0.0
  %594 = vmatpush1.msra.mxu0 0.0
  %595 = vmatprep.subr.mxu0 0.0
  %596 = vmatpush1.msra.mxu0 0.0
  %597 = vmatprep.subr.mxu0 0.0
  %598 = vmatpush1.msra.mxu0 0.0
  %599 = vmatprep.subr.mxu0 0.0
  %600 = vmatpush1.msra.mxu0 0.0
  %601 = vmatprep.subr.mxu0 0.0
  %602 = vmatpush1.msra.mxu0 0.0
  %603 = vmatprep.subr.mxu0 0.0
  %604 = vmatpush1.msra.mxu0 0.0
  %605 = vmatprep.subr.mxu0 0.0
  %606 = vmatpush1.msra.mxu0 0.0
  %607 = vmatprep.subr.mxu0 0.0
  %608 = vmatpush1.msra.mxu0 0.0
  %609 = vmatprep.subr.mxu0 0.0
  %610 = vmatpush1.msra.mxu0 0.0
  %611 = vmatprep.subr.mxu0 0.0
  %612 = vmatpush1.msra.mxu0 0.0
  %613 = vmatprep.subr.mxu0 0.0
  %614 = vmatpush1.msra.mxu0 0.0
  %615 = vmatprep.subr.mxu0 0.0
  %616 = vmatpush1.msra.mxu0 0.0
  %617 = vmatprep.subr.mxu0 0.0
  %618 = vmatpush1.msra.mxu0 0.0
  %619 = vmatprep.subr.mxu0 0.0
  %620 = vmatpush1.msra.mxu0 0.0
  %621 = vmatprep.subr.mxu0 0.0
  %622 = vmatpush1.msra.mxu0 %v591
  %623 = vmatprep.subr.mxu0 0.0
  %624 = vmatpush1.msra.mxu0 %v20
  %625 = vmatprep.subr.mxu0 0.0
  %626 = vmatpush2.msra.mxu0 0.0
  %627 = vmatprep.subr.mxu0 0.0
  %628 = vmatpush2.msra.mxu0 0.0
  %629 = vmatprep.subr.mxu0 0.0
  %630 = vmatpush2.msra.mxu0 0.0
  %631 = vmatprep.subr.mxu0 0.0
  %632 = vmatpush2.msra.mxu0 0.0
  %633 = vmatprep.subr.mxu0 0.0
  %634 = vmatpush2.msra.mxu0 0.0
  %635 = vmatprep.subr.mxu0 0.0
  %636 = vmatpush2.msra.mxu0 0.0
  %637 = vmatprep.subr.mxu0 0.0
  %638 = vmatpush2.msra.mxu0 0.0
  %639 = vmatprep.subr.mxu0 0.0
  %640 = vmatpush2.msra.mxu0 0.0
  %641 = vmatprep.subr.mxu0 0.0
  %642 = vmatpush2.msra.mxu0 0.0
  %643 = vmatprep.subr.mxu0 0.0
  %644 = vmatpush2.msra.mxu0 0.0
  %645 = vmatprep.subr.mxu0 0.0
  %646 = vmatpush2.msra.mxu0 0.0
  %647 = vmatprep.subr.mxu0 0.0
  %648 = vmatpush2.msra.mxu0 0.0
  %649 = vmatprep.subr.mxu0 0.0
  %650 = vmatpush2.msra.mxu0 0.0
  %651 = vmatprep.subr.mxu0 0.0
  %652 = vmatpush2.msra.mxu0 0.0
  %653 = vmatprep.subr.mxu0 0.0
  %654 = vmatpush2.msra.mxu0 0.0
  %655 = vmatprep.subr.mxu0 0.0
  %656 = vmatpush2.msra.mxu0 0.0
  %657 = vmatprep.mubr.f32.mxu0 0.0
  %658 = vmatmul.mubr.f32.gmra.mxu0 %v567
  %v659 = vpop.f32.mrf.mxu0
  %v660 = vadd.f32 %v528, %v659
  %v661 = vpop.f32.mrf.mxu0
  %662 = vmatprep.mubr.f32.mxu0 0.0
  %663 = vmatmul.mubr.f32.gmra.mxu0 %v570
  %v664 = vpop.f32.mrf.mxu0
  %v665 = vadd.f32 %v533, %v664
  %v666 = vpop.f32.mrf.mxu0
  %667 = vmatprep.mubr.f32.mxu0 0.0
  %668 = vmatmul.mubr.f32.gmra.mxu0 %v573
  %v669 = vpop.f32.mrf.mxu0
  %v670 = vadd.f32 %v538, %v669
  %v671 = vpop.f32.mrf.mxu0
  %672 = vmatprep.mubr.f32.mxu0 0.0
  %673 = vmatmul.mubr.f32.gmra.mxu0 %v576
  %v674 = vpop.f32.mrf.mxu0
  %v675 = vadd.f32 %v543, %v674
  %v676 = vpop.f32.mrf.mxu0
  %677 = vmatprep.mubr.f32.mxu0 0.0
  %678 = vmatmul.mubr.f32.gmra.mxu0 %v579
  %v679 = vpop.f32.mrf.mxu0
  %v680 = vadd.f32 %v548, %v679
  %v681 = vpop.f32.mrf.mxu0
  %682 = vmatprep.mubr.f32.mxu0 0.0
  %683 = vmatmul.mubr.f32.gmra.mxu0 %v582
  %v684 = vpop.f32.mrf.mxu0
  %v685 = vadd.f32 %v553, %v684
  %v686 = vpop.f32.mrf.mxu0
  %687 = vmatprep.mubr.f32.mxu0 0.0
  %688 = vmatmul.mubr.f32.gmra.mxu0 %v585
  %v689 = vpop.f32.mrf.mxu0
  %v690 = vadd.f32 %v558, %v689
  %v691 = vpop.f32.mrf.mxu0
  %692 = vmatprep.mubr.f32.mxu0 0.0
  %693 = vmatmul.mubr.f32.gmra.mxu0 %v588
  %v694 = vpop.f32.mrf.mxu0
  %v695 = vadd.f32 %v563, %v694
  %v696 = vpop.f32.mrf.mxu0
  %697 = vdwg.mxu0
  %v698 = vlaneseq
  %v699 = vshrl.u32 %v698, 7
  %v700 = vsub.s32 0, %v699
  %v701 = vrot.slane %v27, %v700
  %v702 = vadd.f32 %v660, %v701
  %v703 = vadd.f32 %v665, %v701
  %v704 = vadd.f32 %v670, %v701
  %v705 = vadd.f32 %v675, %v701
  %v706 = vadd.f32 %v680, %v701
  %v707 = vadd.f32 %v685, %v701
  %v708 = vadd.f32 %v690, %v701
  %v709 = vadd.f32 %v695, %v701
  %v710 = vlaneseq
  %v711 = vshrl.u32 %v710, 7
  %v712 = vsub.s32 0, %v711
  %v713 = vrot.slane %v23, %v712
  %v714 = vlaneseq
  %v715 = vshrl.u32 %v714, 7
  %v716 = vsub.s32 1, %v715
  %v717 = vrot.slane %v23, %v716
  %v718 = vlaneseq
  %v719 = vshrl.u32 %v718, 7
  %v720 = vsub.s32 2, %v719
  %v721 = vrot.slane %v23, %v720
  %v722 = vlaneseq
  %v723 = vshrl.u32 %v722, 7
  %v724 = vsub.s32 3, %v723
  %v725 = vrot.slane %v23, %v724
  %v726 = vlaneseq
  %v727 = vshrl.u32 %v726, 7
  %v728 = vsub.s32 4, %v727
  %v729 = vrot.slane %v23, %v728
  %v730 = vlaneseq
  %v731 = vshrl.u32 %v730, 7
  %v732 = vsub.s32 0, %v731
  %v733 = vrot.slane %v28, %v732
  %v734 = vmul.f32 %v713, 0.0
  %v735 = vadd.f32 %v733, %v734
  %v736 = vmul.f32 %v717, 0.0
  %v737 = vadd.f32 %v735, %v736
  %v738 = vmul.f32 %v721, 0.0
  %v739 = vadd.f32 %v737, %v738
  %v740 = vmul.f32 %v725, 0.0
  %v741 = vadd.f32 %v739, %v740
  %v742 = vmul.f32 %v729, 0.0
  %v743 = vadd.f32 %v741, %v742
  %v744 = vadd.f32 %v702, %v743
  %v745 = vxor.u32 %v744, 2147483648
  %v746 = vmul.f32 %v745, 1.442695
  %v747 = vpow.pop %v746
  %v748 = vadd.f32 %v747, 1.0
  %v749 = vrcp.pop %v748
  %v750 = vmul.f32 1.0, %v749
  %752 = vrot.lane.b32.xlu0 %v743, 118
  %v753 = vpop.permute.xlu0 %752
  %v755 = vmul.f32 %v750, %v753
  %757 = vrot.lane.b32.xlu0 %v755, 10
  %v758 = vpop.permute.xlu0 %757
  %v760 = vadd.f32 %v702, %v758
  %v761 = vtanh.pop %v760
  %v762 = vsub.f32 1.0, %v750
  %764 = vrot.lane.b32.xlu0 %v761, 123
  %v765 = vpop.permute.xlu0 %764
  %v767 = vmul.f32 %v762, %v765
  %v768 = vmul.f32 %v750, 0.0
  %v769 = vadd.f32 %v767, %v768
  %771 = vset.pattern.permute.xlu0 5
  %772 = vperm.xlu0 %771, %v769
  %v773 = vpop.permute.xlu0 %772
  %v775 = vmul.f32 %v773, %v713
  %v776 = vadd.f32 %v733, %v775
  %777 = vset.pattern.permute.xlu0 6
  %778 = vperm.xlu0 %777, %v769
  %v779 = vpop.permute.xlu0 %778
  %v781 = vmul.f32 %v779, %v717
  %v782 = vadd.f32 %v776, %v781
  %783 = vset.pattern.permute.xlu0 7
  %784 = vperm.xlu0 %783, %v769
  %v785 = vpop.permute.xlu0 %784
  %v787 = vmul.f32 %v785, %v721
  %v788 = vadd.f32 %v782, %v787
  %789 = vset.pattern.permute.xlu0 8
  %790 = vperm.xlu0 %789, %v769
  %v791 = vpop.permute.xlu0 %790
  %v793 = vmul.f32 %v791, %v725
  %v794 = vadd.f32 %v788, %v793
  %795 = vset.pattern.permute.xlu0 9
  %796 = vperm.xlu0 %795, %v769
  %v797 = vpop.permute.xlu0 %796
  %v799 = vmul.f32 %v797, %v729
  %v800 = vadd.f32 %v794, %v799
  %v801 = vadd.f32 %v703, %v800
  %v802 = vxor.u32 %v801, 2147483648
  %v803 = vmul.f32 %v802, 1.442695
  %v804 = vpow.pop %v803
  %v805 = vadd.f32 %v804, 1.0
  %v806 = vrcp.pop %v805
  %v807 = vmul.f32 1.0, %v806
  %809 = vrot.lane.b32.xlu0 %v800, 118
  %v810 = vpop.permute.xlu0 %809
  %v812 = vmul.f32 %v807, %v810
  %814 = vrot.lane.b32.xlu0 %v812, 10
  %v815 = vpop.permute.xlu0 %814
  %v817 = vadd.f32 %v703, %v815
  %v818 = vtanh.pop %v817
  %v819 = vsub.f32 1.0, %v807
  %821 = vrot.lane.b32.xlu0 %v818, 123
  %v822 = vpop.permute.xlu0 %821
  %v824 = vmul.f32 %v819, %v822
  %v825 = vmul.f32 %v807, %v769
  %v826 = vadd.f32 %v824, %v825
  %828 = vset.pattern.permute.xlu0 5
  %829 = vperm.xlu0 %828, %v826
  %v830 = vpop.permute.xlu0 %829
  %v832 = vmul.f32 %v830, %v713
  %v833 = vadd.f32 %v733, %v832
  %834 = vset.pattern.permute.xlu0 6
  %835 = vperm.xlu0 %834, %v826
  %v836 = vpop.permute.xlu0 %835
  %v838 = vmul.f32 %v836, %v717
  %v839 = vadd.f32 %v833, %v838
  %840 = vset.pattern.permute.xlu0 7
  %841 = vperm.xlu0 %840, %v826
  %v842 = vpop.permute.xlu0 %841
  %v844 = vmul.f32 %v842, %v721
  %v845 = vadd.f32 %v839, %v844
  %846 = vset.pattern.permute.xlu0 8
  %847 = vperm.xlu0 %846, %v826
  %v848 = vpop.permute.xlu0 %847
  %v850 = vmul.f32 %v848, %v725
  %v851 = vadd.f32 %v845, %v850
  %852 = vset.pattern.permute.xlu0 9
  %853 = vperm.xlu0 %852, %v826
  %v854 = vpop.permute.xlu0 %853
  %v856 = vmul.f32 %v854, %v729
  %v857 = vadd.f32 %v851, %v856
  %v858 = vadd.f32 %v704, %v857
  %v859 = vxor.u32 %v858, 2147483648
  %v860 = vmul.f32 %v859, 1.442695
  %v861 = vpow.pop %v860
  %v862 = vadd.f32 %v861, 1.0
  %v863 = vrcp.pop %v862
  %v864 = vmul.f32 1.0, %v863
  %866 = vrot.lane.b32.xlu0 %v857, 118
  %v867 = vpop.permute.xlu0 %866
  %v869 = vmul.f32 %v864, %v867
  %871 = vrot.lane.b32.xlu0 %v869, 10
  %v872 = vpop.permute.xlu0 %871
  %v874 = vadd.f32 %v704, %v872
  %v875 = vtanh.pop %v874
  %v876 = vsub.f32 1.0, %v864
  %878 = vrot.lane.b32.xlu0 %v875, 123
  %v879 = vpop.permute.xlu0 %878
  %v881 = vmul.f32 %v876, %v879
  %v882 = vmul.f32 %v864, %v826
  %v883 = vadd.f32 %v881, %v882
  %885 = vset.pattern.permute.xlu0 5
  %886 = vperm.xlu0 %885, %v883
  %v887 = vpop.permute.xlu0 %886
  %v889 = vmul.f32 %v887, %v713
  %v890 = vadd.f32 %v733, %v889
  %891 = vset.pattern.permute.xlu0 6
  %892 = vperm.xlu0 %891, %v883
  %v893 = vpop.permute.xlu0 %892
  %v895 = vmul.f32 %v893, %v717
  %v896 = vadd.f32 %v890, %v895
  %897 = vset.pattern.permute.xlu0 7
  %898 = vperm.xlu0 %897, %v883
  %v899 = vpop.permute.xlu0 %898
  %v901 = vmul.f32 %v899, %v721
  %v902 = vadd.f32 %v896, %v901
  %903 = vset.pattern.permute.xlu0 8
  %904 = vperm.xlu0 %903, %v883
  %v905 = vpop.permute.xlu0 %904
  %v907 = vmul.f32 %v905, %v725
  %v908 = vadd.f32 %v902, %v907
  %909 = vset.pattern.permute.xlu0 9
  %910 = vperm.xlu0 %909, %v883
  %v911 = vpop.permute.xlu0 %910
  %v913 = vmul.f32 %v911, %v729
  %v914 = vadd.f32 %v908, %v913
  %v915 = vadd.f32 %v705, %v914
  %v916 = vxor.u32 %v915, 2147483648
  %v917 = vmul.f32 %v916, 1.442695
  %v918 = vpow.pop %v917
  %v919 = vadd.f32 %v918, 1.0
  %v920 = vrcp.pop %v919
  %v921 = vmul.f32 1.0, %v920
  %923 = vrot.lane.b32.xlu0 %v914, 118
  %v924 = vpop.permute.xlu0 %923
  %v926 = vmul.f32 %v921, %v924
  %928 = vrot.lane.b32.xlu0 %v926, 10
  %v929 = vpop.permute.xlu0 %928
  %v931 = vadd.f32 %v705, %v929
  %v932 = vtanh.pop %v931
  %v933 = vsub.f32 1.0, %v921
  %935 = vrot.lane.b32.xlu0 %v932, 123
  %v936 = vpop.permute.xlu0 %935
  %v938 = vmul.f32 %v933, %v936
  %v939 = vmul.f32 %v921, %v883
  %v940 = vadd.f32 %v938, %v939
  %942 = vset.pattern.permute.xlu0 5
  %943 = vperm.xlu0 %942, %v940
  %v944 = vpop.permute.xlu0 %943
  %v946 = vmul.f32 %v944, %v713
  %v947 = vadd.f32 %v733, %v946
  %948 = vset.pattern.permute.xlu0 6
  %949 = vperm.xlu0 %948, %v940
  %v950 = vpop.permute.xlu0 %949
  %v952 = vmul.f32 %v950, %v717
  %v953 = vadd.f32 %v947, %v952
  %954 = vset.pattern.permute.xlu0 7
  %955 = vperm.xlu0 %954, %v940
  %v956 = vpop.permute.xlu0 %955
  %v958 = vmul.f32 %v956, %v721
  %v959 = vadd.f32 %v953, %v958
  %960 = vset.pattern.permute.xlu0 8
  %961 = vperm.xlu0 %960, %v940
  %v962 = vpop.permute.xlu0 %961
  %v964 = vmul.f32 %v962, %v725
  %v965 = vadd.f32 %v959, %v964
  %966 = vset.pattern.permute.xlu0 9
  %967 = vperm.xlu0 %966, %v940
  %v968 = vpop.permute.xlu0 %967
  %v970 = vmul.f32 %v968, %v729
  %v971 = vadd.f32 %v965, %v970
  %v972 = vadd.f32 %v706, %v971
  %v973 = vxor.u32 %v972, 2147483648
  %v974 = vmul.f32 %v973, 1.442695
  %v975 = vpow.pop %v974
  %v976 = vadd.f32 %v975, 1.0
  %v977 = vrcp.pop %v976
  %v978 = vmul.f32 1.0, %v977
  %980 = vrot.lane.b32.xlu0 %v971, 118
  %v981 = vpop.permute.xlu0 %980
  %v983 = vmul.f32 %v978, %v981
  %985 = vrot.lane.b32.xlu0 %v983, 10
  %v986 = vpop.permute.xlu0 %985
  %v988 = vadd.f32 %v706, %v986
  %v989 = vtanh.pop %v988
  %v990 = vsub.f32 1.0, %v978
  %992 = vrot.lane.b32.xlu0 %v989, 123
  %v993 = vpop.permute.xlu0 %992
  %v995 = vmul.f32 %v990, %v993
  %v996 = vmul.f32 %v978, %v940
  %v997 = vadd.f32 %v995, %v996
  %999 = vset.pattern.permute.xlu0 5
  %1000 = vperm.xlu0 %999, %v997
  %v1001 = vpop.permute.xlu0 %1000
  %v1003 = vmul.f32 %v1001, %v713
  %v1004 = vadd.f32 %v733, %v1003
  %1005 = vset.pattern.permute.xlu0 6
  %1006 = vperm.xlu0 %1005, %v997
  %v1007 = vpop.permute.xlu0 %1006
  %v1009 = vmul.f32 %v1007, %v717
  %v1010 = vadd.f32 %v1004, %v1009
  %1011 = vset.pattern.permute.xlu0 7
  %1012 = vperm.xlu0 %1011, %v997
  %v1013 = vpop.permute.xlu0 %1012
  %v1015 = vmul.f32 %v1013, %v721
  %v1016 = vadd.f32 %v1010, %v1015
  %1017 = vset.pattern.permute.xlu0 8
  %1018 = vperm.xlu0 %1017, %v997
  %v1019 = vpop.permute.xlu0 %1018
  %v1021 = vmul.f32 %v1019, %v725
  %v1022 = vadd.f32 %v1016, %v1021
  %1023 = vset.pattern.permute.xlu0 9
  %1024 = vperm.xlu0 %1023, %v997
  %v1025 = vpop.permute.xlu0 %1024
  %v1027 = vmul.f32 %v1025, %v729
  %v1028 = vadd.f32 %v1022, %v1027
  %v1029 = vadd.f32 %v707, %v1028
  %v1030 = vxor.u32 %v1029, 2147483648
  %v1031 = vmul.f32 %v1030, 1.442695
  %v1032 = vpow.pop %v1031
  %v1033 = vadd.f32 %v1032, 1.0
  %v1034 = vrcp.pop %v1033
  %v1035 = vmul.f32 1.0, %v1034
  %1037 = vrot.lane.b32.xlu0 %v1028, 118
  %v1038 = vpop.permute.xlu0 %1037
  %v1040 = vmul.f32 %v1035, %v1038
  %1042 = vrot.lane.b32.xlu0 %v1040, 10
  %v1043 = vpop.permute.xlu0 %1042
  %v1045 = vadd.f32 %v707, %v1043
  %v1046 = vtanh.pop %v1045
  %v1047 = vsub.f32 1.0, %v1035
  %1049 = vrot.lane.b32.xlu0 %v1046, 123
  %v1050 = vpop.permute.xlu0 %1049
  %v1052 = vmul.f32 %v1047, %v1050
  %v1053 = vmul.f32 %v1035, %v997
  %v1054 = vadd.f32 %v1052, %v1053
  %1056 = vset.pattern.permute.xlu0 5
  %1057 = vperm.xlu0 %1056, %v1054
  %v1058 = vpop.permute.xlu0 %1057
  %v1060 = vmul.f32 %v1058, %v713
  %v1061 = vadd.f32 %v733, %v1060
  %1062 = vset.pattern.permute.xlu0 6
  %1063 = vperm.xlu0 %1062, %v1054
  %v1064 = vpop.permute.xlu0 %1063
  %v1066 = vmul.f32 %v1064, %v717
  %v1067 = vadd.f32 %v1061, %v1066
  %1068 = vset.pattern.permute.xlu0 7
  %1069 = vperm.xlu0 %1068, %v1054
  %v1070 = vpop.permute.xlu0 %1069
  %v1072 = vmul.f32 %v1070, %v721
  %v1073 = vadd.f32 %v1067, %v1072
  %1074 = vset.pattern.permute.xlu0 8
  %1075 = vperm.xlu0 %1074, %v1054
  %v1076 = vpop.permute.xlu0 %1075
  %v1078 = vmul.f32 %v1076, %v725
  %v1079 = vadd.f32 %v1073, %v1078
  %1080 = vset.pattern.permute.xlu0 9
  %1081 = vperm.xlu0 %1080, %v1054
  %v1082 = vpop.permute.xlu0 %1081
  %v1084 = vmul.f32 %v1082, %v729
  %v1085 = vadd.f32 %v1079, %v1084
  %v1086 = vadd.f32 %v708, %v1085
  %v1087 = vxor.u32 %v1086, 2147483648
  %v1088 = vmul.f32 %v1087, 1.442695
  %v1089 = vpow.pop %v1088
  %v1090 = vadd.f32 %v1089, 1.0
  %v1091 = vrcp.pop %v1090
  %v1092 = vmul.f32 1.0, %v1091
  %1094 = vrot.lane.b32.xlu0 %v1085, 118
  %v1095 = vpop.permute.xlu0 %1094
  %v1097 = vmul.f32 %v1092, %v1095
  %1099 = vrot.lane.b32.xlu0 %v1097, 10
  %v1100 = vpop.permute.xlu0 %1099
  %v1102 = vadd.f32 %v708, %v1100
  %v1103 = vtanh.pop %v1102
  %v1104 = vsub.f32 1.0, %v1092
  %1106 = vrot.lane.b32.xlu0 %v1103, 123
  %v1107 = vpop.permute.xlu0 %1106
  %v1109 = vmul.f32 %v1104, %v1107
  %v1110 = vmul.f32 %v1092, %v1054
  %v1111 = vadd.f32 %v1109, %v1110
  %1113 = vset.pattern.permute.xlu0 5
  %1114 = vperm.xlu0 %1113, %v1111
  %v1115 = vpop.permute.xlu0 %1114
  %v1117 = vmul.f32 %v1115, %v713
  %v1118 = vadd.f32 %v733, %v1117
  %1119 = vset.pattern.permute.xlu0 6
  %1120 = vperm.xlu0 %1119, %v1111
  %v1121 = vpop.permute.xlu0 %1120
  %v1123 = vmul.f32 %v1121, %v717
  %v1124 = vadd.f32 %v1118, %v1123
  %1125 = vset.pattern.permute.xlu0 7
  %1126 = vperm.xlu0 %1125, %v1111
  %v1127 = vpop.permute.xlu0 %1126
  %v1129 = vmul.f32 %v1127, %v721
  %v1130 = vadd.f32 %v1124, %v1129
  %1131 = vset.pattern.permute.xlu0 8
  %1132 = vperm.xlu0 %1131, %v1111
  %v1133 = vpop.permute.xlu0 %1132
  %v1135 = vmul.f32 %v1133, %v725
  %v1136 = vadd.f32 %v1130, %v1135
  %1137 = vset.pattern.permute.xlu0 9
  %1138 = vperm.xlu0 %1137, %v1111
  %v1139 = vpop.permute.xlu0 %1138
  %v1141 = vmul.f32 %v1139, %v729
  %v1142 = vadd.f32 %v1136, %v1141
  %v1143 = vadd.f32 %v709, %v1142
  %v1144 = vxor.u32 %v1143, 2147483648
  %v1145 = vmul.f32 %v1144, 1.442695
  %v1146 = vpow.pop %v1145
  %v1147 = vadd.f32 %v1146, 1.0
  %v1148 = vrcp.pop %v1147
  %v1149 = vmul.f32 1.0, %v1148
  %1151 = vrot.lane.b32.xlu0 %v1142, 118
  %v1152 = vpop.permute.xlu0 %1151
  %v1154 = vmul.f32 %v1149, %v1152
  %1156 = vrot.lane.b32.xlu0 %v1154, 10
  %v1157 = vpop.permute.xlu0 %1156
  %v1159 = vadd.f32 %v709, %v1157
  %v1160 = vtanh.pop %v1159
  %v1161 = vsub.f32 1.0, %v1149
  %1163 = vrot.lane.b32.xlu0 %v1160, 123
  %v1164 = vpop.permute.xlu0 %1163
  %v1166 = vmul.f32 %v1161, %v1164
  %v1167 = vmul.f32 %v1149, %v1111
  %v1168 = vadd.f32 %v1166, %v1167
  %1170 = vrot.lane.b32.xlu0 %v421, 5
  %v1171 = vpop.permute.xlu0 %1170
  %v1173 = vmul.f32 %v1168, %v1171
  %1175 = vrot.lane.b32.xlu0 %v1173, 123
  %v1176 = vpop.permute.xlu0 %1175
  %vm1178 = vcmask 39936
  %v1179 = vsel %vm1178, %v1176, 0.0
  %1180 = vadd.xlane.f32.xlu0 %v1179
  %v1181 = vpop.xlane.xlu0 %1180
  %s1182 = sld [smem:[#allocation2]]
  %v1183 = vstv %s1182
  %v1184 = vmul.f32 %v1181, %v1183
  %v1185 = vxor.u32 %v1184, 2147483648
  %v1186 = vmul.f32 %v1185, 1.442695
  %v1187 = vpow.pop %v1186
  %v1188 = vadd.f32 %v1187, 1.0
  %v1189 = vrcp.pop %v1188
  %v1190 = vmul.f32 1.0, %v1189
  %v1191 = vmax.f32 %v1190, 0.01
  %v1192 = vmin.f32 %v1191, 0.99
  %vm1193 = vcmask 7168
  %1194 = vst.msk [vmem:[%s3] sm:$0xff] %vm1193, %v1192
  // Predicated region
  $region14: #{forward.1} parent=0 // pred_check
    _
  $region15: #{forward.1} parent=0 // pred_check_branch
    %1196 = sbr.rel (0) target = $region17
  $region16: #{forward.1} parent=0 // pred_region
    _
  $region17: #{forward.1} parent=0 // pred_fallthru
    _
  // Predicated region
  $region18: #{forward.1} parent=0 // pred_check
    _
  $region19: #{forward.1} parent=0 // pred_check_branch
    %1198 = sbr.rel (0) target = $region21
  $region20: #{forward.1} parent=0 // pred_region
    _
  $region21: #{forward.1} parent=0 // pred_fallthru
    _

</llo_original>
